<compile_context>
chip_gen: v5e
topology: v5e:2x2
jax: 0.10.0
libtpu: 0.0.40
codegen_flags: <defaults>
</compile_context>

<pallas_src>
import functools

import jax
import jax.numpy as jnp
from jax.experimental import pallas as pl
from jax.experimental.pallas import tpu as pltpu


def _autoencoder_kernel(
    x_ref,
    # encoder params
    ew1, eb1, ew2, eb2, ew3, eb3, ew4, eb4,
    # decoder params
    dw1, db1, dw2, db2, dw3, db3, dw4, db4,
    # outputs
    enc_ref, dec_ref,
):
    f32 = jnp.float32
    bf16 = jnp.bfloat16

    def linear(h, w_ref, b_ref):
        # bf16 operands on the MXU, f32 accumulation, f32 bias add.
        return (
            jnp.dot(h.astype(bf16), w_ref[...], preferred_element_type=f32)
            + b_ref[...]
        )

    x = x_ref[...]

    # ---- encoder: Linear->Tanh->(Dropout)->Linear->Tanh->(Dropout)->Linear->Tanh->Linear
    h = jnp.tanh(linear(x, ew1, eb1))          # [tb, 512]
    h = jnp.tanh(linear(h, ew2, eb2))          # [tb, 256]
    h = jnp.tanh(linear(h, ew3, eb3))          # [tb, 128]
    encoded = linear(h, ew4, eb4)              # [tb, output_dim]

    # ---- decoder: (Linear->Tanh->(Dropout)) x3 -> Linear -> Sigmoid
    g = jnp.tanh(linear(encoded, dw1, db1))    # [tb, 128]
    g = jnp.tanh(linear(g, dw2, db2))          # [tb, 256]
    g = jnp.tanh(linear(g, dw3, db3))          # [tb, 256]
    logits = linear(g, dw4, db4)               # [tb, input_dim]
    # sigmoid: exp on the EUP, reciprocal on the EUP vrcp slot (approx).
    decoded = pl.reciprocal(1.0 + jnp.exp(-logits), approx=True)

    enc_ref[...] = encoded.astype(enc_ref.dtype)
    dec_ref[...] = decoded.astype(dec_ref.dtype)

    # TODO(synk): nn.Dropout(0.4) is identity in eval mode; training-mode dropout
    # (pltpu.prng_seed + stateful_bernoulli) is intentionally not emulated here.
    # TODO(synk): encoded/decoded last dims (16/32) are below 128 lanes, so stores
    # are masked; a lane-dense repacked output slab would help large-batch v5e.


def init_params(key, input_dim, output_dim, dtype=jnp.float32):
    """PyTorch-style Linear init: U(-1/sqrt(fan_in), 1/sqrt(fan_in)).

    Weights returned as [in, out]; biases as [1, out].
    """
    enc_dims = [(input_dim, 512), (512, 256), (256, 128), (128, output_dim)]
    dec_dims = [(output_dim, 128), (128, 256), (256, 256), (256, input_dim)]
    params = []
    for fan_in, fan_out in enc_dims + dec_dims:
        key, kw, kb = jax.random.split(key, 3)
        bound = 1.0 / (fan_in ** 0.5)
        w = jax.random.uniform(kw, (fan_in, fan_out), dtype, -bound, bound)
        b = jax.random.uniform(kb, (1, fan_out), dtype, -bound, bound)
        params.append(w)
        params.append(b)
    return params  # 16 arrays: ew1,eb1,...,ew4,eb4, dw1,db1,...,dw4,db4


def _round_up(n, m):
    return (n + m - 1) // m * m


@functools.partial(jax.jit, static_argnames=("input_dim", "output_dim"))
def autoencoder_forward(x, params, *, input_dim, output_dim):
    batch = x.shape[0]

    # Weights -> bf16 for the MXU (halves DMA/VMEM bytes); biases stay f32.
    casted = [
        p.astype(jnp.bfloat16) if idx % 2 == 0 else p.astype(jnp.float32)
        for idx, p in enumerate(params)
    ]

    # Batch tile: multiple of 8 sublanes, up to 256 rows (256-wide MXU on v6e/v7x).
    tile_b = min(256, _round_up(batch, 8))
    padded_b = _round_up(batch, tile_b)
    if padded_b != batch:
        x = jnp.pad(x, ((0, padded_b - batch), (0, 0)))
    grid = (padded_b // tile_b,)

    x_spec = pl.BlockSpec((tile_b, input_dim), lambda i: (i, 0))
    enc_spec = pl.BlockSpec((tile_b, output_dim), lambda i: (i, 0))
    dec_spec = pl.BlockSpec((tile_b, input_dim), lambda i: (i, 0))
    # Weights/biases: full-array VMEM blocks, constant index_map -> DMA'd once,
    # resident across all batch tiles.
    w_specs = [pl.BlockSpec(p.shape, lambda i: (0, 0)) for p in casted]

    layer_dims = [
        (input_dim, 512), (512, 256), (256, 128), (128, output_dim),
        (output_dim, 128), (128, 256), (256, 256), (256, input_dim),
    ]
    flops = 2 * padded_b * sum(a * b for a, b in layer_dims)
    transcendentals = padded_b * (512 + 256 + 128 + 128 + 256 + 256 + input_dim)
    bytes_accessed = (
        padded_b * input_dim * x.dtype.itemsize
        + sum(p.size * p.dtype.itemsize for p in casted)
        + padded_b * (output_dim + input_dim) * x.dtype.itemsize
    )

    encoded, decoded = pl.pallas_call(
        _autoencoder_kernel,
        grid=grid,
        out_shape=(
            jax.ShapeDtypeStruct((padded_b, output_dim), x.dtype),  # encoded
            jax.ShapeDtypeStruct((padded_b, input_dim), x.dtype),   # decoded
        ),
        in_specs=[x_spec] + w_specs,
        out_specs=(enc_spec, dec_spec),
        compiler_params=pltpu.CompilerParams(
            dimension_semantics=("parallel",),   # shard batch tiles across v7x cores
            vmem_limit_bytes=16 << 20,
        ),
        cost_estimate=pl.CostEstimate(
            flops=flops,
            transcendentals=transcendentals,
            bytes_accessed=bytes_accessed,
        ),
    )(x, *casted)

    return encoded[:batch], decoded[:batch]


def reference_forward(x, params):
    (ew1, eb1, ew2, eb2, ew3, eb3, ew4, eb4,
     dw1, db1, dw2, db2, dw3, db3, dw4, db4) = params
    h = jnp.tanh(x @ ew1 + eb1)
    h = jnp.tanh(h @ ew2 + eb2)
    h = jnp.tanh(h @ ew3 + eb3)
    encoded = h @ ew4 + eb4
    g = jnp.tanh(encoded @ dw1 + db1)
    g = jnp.tanh(g @ dw2 + db2)
    g = jnp.tanh(g @ dw3 + db3)
    decoded = jax.nn.sigmoid(g @ dw4 + db4)
    return encoded, decoded


if __name__ == "__main__":
    INPUT_DIM = 32
    OUTPUT_DIM = 16
    BATCH = 8

    key = jax.random.PRNGKey(0)
    key, kx = jax.random.split(key)
    x = jax.random.normal(kx, (BATCH, INPUT_DIM), jnp.float32)
    params = init_params(key, INPUT_DIM, OUTPUT_DIM)

    encoded, decoded = autoencoder_forward(
        x, params, input_dim=INPUT_DIM, output_dim=OUTPUT_DIM
    )
    jax.block_until_ready((encoded, decoded))

    # correctness check against pure-JAX f32 reference (bf16 matmuls + approx
    # reciprocal in-kernel -> relaxed tolerance).
    ref_enc, ref_dec = reference_forward(x, params)
    assert encoded.shape == (BATCH, OUTPUT_DIM)
    assert decoded.shape == (BATCH, INPUT_DIM)
    assert jnp.allclose(encoded, ref_enc, atol=3e-2, rtol=3e-2)
    assert jnp.allclose(decoded, ref_dec, atol=3e-2, rtol=3e-2)

    print("KERNEL_OK")
</pallas_src>

<mosaic_0001>
module attributes {stable_mosaic.version = 11 : i64} {
  func.func @_autoencoder_kernel(%arg0: i32, %arg1: memref<8x32xf32, #tpu.memory_space<vmem>>, %arg2: memref<32x512xbf16, #tpu.memory_space<vmem>>, %arg3: memref<1x512xf32, #tpu.memory_space<vmem>>, %arg4: memref<512x256xbf16, #tpu.memory_space<vmem>>, %arg5: memref<1x256xf32, #tpu.memory_space<vmem>>, %arg6: memref<256x128xbf16, #tpu.memory_space<vmem>>, %arg7: memref<1x128xf32, #tpu.memory_space<vmem>>, %arg8: memref<128x16xbf16, #tpu.memory_space<vmem>>, %arg9: memref<1x16xf32, #tpu.memory_space<vmem>>, %arg10: memref<16x128xbf16, #tpu.memory_space<vmem>>, %arg11: memref<1x128xf32, #tpu.memory_space<vmem>>, %arg12: memref<128x256xbf16, #tpu.memory_space<vmem>>, %arg13: memref<1x256xf32, #tpu.memory_space<vmem>>, %arg14: memref<256x256xbf16, #tpu.memory_space<vmem>>, %arg15: memref<1x256xf32, #tpu.memory_space<vmem>>, %arg16: memref<256x32xbf16, #tpu.memory_space<vmem>>, %arg17: memref<1x32xf32, #tpu.memory_space<vmem>>, %arg18: memref<8x16xf32, #tpu.memory_space<vmem>>, %arg19: memref<8x32xf32, #tpu.memory_space<vmem>>) attributes {dimension_semantics = [#tpu.dimension_semantics<parallel>], iteration_bounds = array<i64: 1>, scalar_prefetch = 0 : i64, scratch_operands = 0 : i64, tpu.core_type = #tpu.core_type<tc>, window_params = [{transform_indices = @transform_0, window_bounds = array<i64: 8, 32>}, {pipeline_mode = #tpu.pipeline_mode<synchronous>, transform_indices = @transform_1, window_bounds = array<i64: 32, 512>}, {pipeline_mode = #tpu.pipeline_mode<synchronous>, transform_indices = @transform_2, window_bounds = array<i64: 1, 512>}, {pipeline_mode = #tpu.pipeline_mode<synchronous>, transform_indices = @transform_3, window_bounds = array<i64: 512, 256>}, {pipeline_mode = #tpu.pipeline_mode<synchronous>, transform_indices = @transform_4, window_bounds = array<i64: 1, 256>}, {pipeline_mode = #tpu.pipeline_mode<synchronous>, transform_indices = @transform_5, window_bounds = array<i64: 256, 128>}, {pipeline_mode = #tpu.pipeline_mode<synchronous>, transform_indices = @transform_6, window_bounds = array<i64: 1, 128>}, {pipeline_mode = #tpu.pipeline_mode<synchronous>, transform_indices = @transform_7, window_bounds = array<i64: 128, 16>}, {pipeline_mode = #tpu.pipeline_mode<synchronous>, transform_indices = @transform_8, window_bounds = array<i64: 1, 16>}, {pipeline_mode = #tpu.pipeline_mode<synchronous>, transform_indices = @transform_9, window_bounds = array<i64: 16, 128>}, {pipeline_mode = #tpu.pipeline_mode<synchronous>, transform_indices = @transform_10, window_bounds = array<i64: 1, 128>}, {pipeline_mode = #tpu.pipeline_mode<synchronous>, transform_indices = @transform_11, window_bounds = array<i64: 128, 256>}, {pipeline_mode = #tpu.pipeline_mode<synchronous>, transform_indices = @transform_12, window_bounds = array<i64: 1, 256>}, {pipeline_mode = #tpu.pipeline_mode<synchronous>, transform_indices = @transform_13, window_bounds = array<i64: 256, 256>}, {pipeline_mode = #tpu.pipeline_mode<synchronous>, transform_indices = @transform_14, window_bounds = array<i64: 1, 256>}, {pipeline_mode = #tpu.pipeline_mode<synchronous>, transform_indices = @transform_15, window_bounds = array<i64: 256, 32>}, {pipeline_mode = #tpu.pipeline_mode<synchronous>, transform_indices = @transform_16, window_bounds = array<i64: 1, 32>}, {transform_indices = @transform_17, window_bounds = array<i64: 8, 16>}, {transform_indices = @transform_18, window_bounds = array<i64: 8, 32>}]} {
    %c0 = arith.constant 0 : index
    %c0_0 = arith.constant 0 : index
    %0 = vector.load %arg1[%c0, %c0_0] : memref<8x32xf32, #tpu.memory_space<vmem>>, vector<8x32xf32>
    %1 = arith.truncf %0 : vector<8x32xf32> to vector<8x32xbf16>
    %c0_1 = arith.constant 0 : index
    %c0_2 = arith.constant 0 : index
    %2 = vector.load %arg2[%c0_1, %c0_2] : memref<32x512xbf16, #tpu.memory_space<vmem>>, vector<32x512xbf16>
    %cst = arith.constant dense<0.000000e+00> : vector<8x512xf32>
    %3 = tpu.matmul %1, %2, %cst {dimension_numbers = #tpu.dot_dimension_numbers<[1], [0], [0], [1], [0, 0, 1, 1], [], []>} : vector<8x32xbf16>, vector<32x512xbf16>, vector<8x512xf32> -> vector<8x512xf32>
    %c0_3 = arith.constant 0 : index
    %c0_4 = arith.constant 0 : index
    %4 = vector.load %arg3[%c0_3, %c0_4] : memref<1x512xf32, #tpu.memory_space<vmem>>, vector<1x512xf32>
    %5 = vector.broadcast %4 : vector<1x512xf32> to vector<8x512xf32>
    %6 = arith.addf %3, %5 : vector<8x512xf32>
    %7 = math.tanh %6 : vector<8x512xf32>
    %8 = arith.truncf %7 : vector<8x512xf32> to vector<8x512xbf16>
    %c0_5 = arith.constant 0 : index
    %c0_6 = arith.constant 0 : index
    %9 = vector.load %arg4[%c0_5, %c0_6] : memref<512x256xbf16, #tpu.memory_space<vmem>>, vector<512x256xbf16>
    %cst_7 = arith.constant dense<0.000000e+00> : vector<8x256xf32>
    %10 = tpu.matmul %8, %9, %cst_7 {dimension_numbers = #tpu.dot_dimension_numbers<[1], [0], [0], [1], [0, 0, 1, 1], [], []>} : vector<8x512xbf16>, vector<512x256xbf16>, vector<8x256xf32> -> vector<8x256xf32>
    %c0_8 = arith.constant 0 : index
    %c0_9 = arith.constant 0 : index
    %11 = vector.load %arg5[%c0_8, %c0_9] : memref<1x256xf32, #tpu.memory_space<vmem>>, vector<1x256xf32>
    %12 = vector.broadcast %11 : vector<1x256xf32> to vector<8x256xf32>
    %13 = arith.addf %10, %12 : vector<8x256xf32>
    %14 = math.tanh %13 : vector<8x256xf32>
    %15 = arith.truncf %14 : vector<8x256xf32> to vector<8x256xbf16>
    %c0_10 = arith.constant 0 : index
    %c0_11 = arith.constant 0 : index
    %16 = vector.load %arg6[%c0_10, %c0_11] : memref<256x128xbf16, #tpu.memory_space<vmem>>, vector<256x128xbf16>
    %cst_12 = arith.constant dense<0.000000e+00> : vector<8x128xf32>
    %17 = tpu.matmul %15, %16, %cst_12 {dimension_numbers = #tpu.dot_dimension_numbers<[1], [0], [0], [1], [0, 0, 1, 1], [], []>} : vector<8x256xbf16>, vector<256x128xbf16>, vector<8x128xf32> -> vector<8x128xf32>
    %c0_13 = arith.constant 0 : index
    %c0_14 = arith.constant 0 : index
    %18 = vector.load %arg7[%c0_13, %c0_14] : memref<1x128xf32, #tpu.memory_space<vmem>>, vector<1x128xf32>
    %19 = vector.broadcast %18 : vector<1x128xf32> to vector<8x128xf32>
    %20 = arith.addf %17, %19 : vector<8x128xf32>
    %21 = math.tanh %20 : vector<8x128xf32>
    %22 = arith.truncf %21 : vector<8x128xf32> to vector<8x128xbf16>
    %c0_15 = arith.constant 0 : index
    %c0_16 = arith.constant 0 : index
    %23 = vector.load %arg8[%c0_15, %c0_16] : memref<128x16xbf16, #tpu.memory_space<vmem>>, vector<128x16xbf16>
    %cst_17 = arith.constant dense<0.000000e+00> : vector<8x16xf32>
    %24 = tpu.matmul %22, %23, %cst_17 {dimension_numbers = #tpu.dot_dimension_numbers<[1], [0], [0], [1], [0, 0, 1, 1], [], []>} : vector<8x128xbf16>, vector<128x16xbf16>, vector<8x16xf32> -> vector<8x16xf32>
    %c0_18 = arith.constant 0 : index
    %c0_19 = arith.constant 0 : index
    %25 = vector.load %arg9[%c0_18, %c0_19] : memref<1x16xf32, #tpu.memory_space<vmem>>, vector<1x16xf32>
    %26 = vector.broadcast %25 : vector<1x16xf32> to vector<8x16xf32>
    %27 = arith.addf %24, %26 : vector<8x16xf32>
    %28 = arith.truncf %27 : vector<8x16xf32> to vector<8x16xbf16>
    %c0_20 = arith.constant 0 : index
    %c0_21 = arith.constant 0 : index
    %29 = vector.load %arg10[%c0_20, %c0_21] : memref<16x128xbf16, #tpu.memory_space<vmem>>, vector<16x128xbf16>
    %cst_22 = arith.constant dense<0.000000e+00> : vector<8x128xf32>
    %30 = tpu.matmul %28, %29, %cst_22 {dimension_numbers = #tpu.dot_dimension_numbers<[1], [0], [0], [1], [0, 0, 1, 1], [], []>} : vector<8x16xbf16>, vector<16x128xbf16>, vector<8x128xf32> -> vector<8x128xf32>
    %c0_23 = arith.constant 0 : index
    %c0_24 = arith.constant 0 : index
    %31 = vector.load %arg11[%c0_23, %c0_24] : memref<1x128xf32, #tpu.memory_space<vmem>>, vector<1x128xf32>
    %32 = vector.broadcast %31 : vector<1x128xf32> to vector<8x128xf32>
    %33 = arith.addf %30, %32 : vector<8x128xf32>
    %34 = math.tanh %33 : vector<8x128xf32>
    %35 = arith.truncf %34 : vector<8x128xf32> to vector<8x128xbf16>
    %c0_25 = arith.constant 0 : index
    %c0_26 = arith.constant 0 : index
    %36 = vector.load %arg12[%c0_25, %c0_26] : memref<128x256xbf16, #tpu.memory_space<vmem>>, vector<128x256xbf16>
    %cst_27 = arith.constant dense<0.000000e+00> : vector<8x256xf32>
    %37 = tpu.matmul %35, %36, %cst_27 {dimension_numbers = #tpu.dot_dimension_numbers<[1], [0], [0], [1], [0, 0, 1, 1], [], []>} : vector<8x128xbf16>, vector<128x256xbf16>, vector<8x256xf32> -> vector<8x256xf32>
    %c0_28 = arith.constant 0 : index
    %c0_29 = arith.constant 0 : index
    %38 = vector.load %arg13[%c0_28, %c0_29] : memref<1x256xf32, #tpu.memory_space<vmem>>, vector<1x256xf32>
    %39 = vector.broadcast %38 : vector<1x256xf32> to vector<8x256xf32>
    %40 = arith.addf %37, %39 : vector<8x256xf32>
    %41 = math.tanh %40 : vector<8x256xf32>
    %42 = arith.truncf %41 : vector<8x256xf32> to vector<8x256xbf16>
    %c0_30 = arith.constant 0 : index
    %c0_31 = arith.constant 0 : index
    %43 = vector.load %arg14[%c0_30, %c0_31] : memref<256x256xbf16, #tpu.memory_space<vmem>>, vector<256x256xbf16>
    %cst_32 = arith.constant dense<0.000000e+00> : vector<8x256xf32>
    %44 = tpu.matmul %42, %43, %cst_32 {dimension_numbers = #tpu.dot_dimension_numbers<[1], [0], [0], [1], [0, 0, 1, 1], [], []>} : vector<8x256xbf16>, vector<256x256xbf16>, vector<8x256xf32> -> vector<8x256xf32>
    %c0_33 = arith.constant 0 : index
    %c0_34 = arith.constant 0 : index
    %45 = vector.load %arg15[%c0_33, %c0_34] : memref<1x256xf32, #tpu.memory_space<vmem>>, vector<1x256xf32>
    %46 = vector.broadcast %45 : vector<1x256xf32> to vector<8x256xf32>
    %47 = arith.addf %44, %46 : vector<8x256xf32>
    %48 = math.tanh %47 : vector<8x256xf32>
    %49 = arith.truncf %48 : vector<8x256xf32> to vector<8x256xbf16>
    %c0_35 = arith.constant 0 : index
    %c0_36 = arith.constant 0 : index
    %50 = vector.load %arg16[%c0_35, %c0_36] : memref<256x32xbf16, #tpu.memory_space<vmem>>, vector<256x32xbf16>
    %cst_37 = arith.constant dense<0.000000e+00> : vector<8x32xf32>
    %51 = tpu.matmul %49, %50, %cst_37 {dimension_numbers = #tpu.dot_dimension_numbers<[1], [0], [0], [1], [0, 0, 1, 1], [], []>} : vector<8x256xbf16>, vector<256x32xbf16>, vector<8x32xf32> -> vector<8x32xf32>
    %c0_38 = arith.constant 0 : index
    %c0_39 = arith.constant 0 : index
    %52 = vector.load %arg17[%c0_38, %c0_39] : memref<1x32xf32, #tpu.memory_space<vmem>>, vector<1x32xf32>
    %53 = vector.broadcast %52 : vector<1x32xf32> to vector<8x32xf32>
    %54 = arith.addf %51, %53 : vector<8x32xf32>
    %cst_40 = arith.constant 0.000000e+00 : f32
    %55 = vector.broadcast %cst_40 : f32 to vector<8x32xf32>
    %56 = arith.subf %55, %54 : vector<8x32xf32>
    %57 = math.exp %56 : vector<8x32xf32>
    %cst_41 = arith.constant 1.000000e+00 : f32
    %58 = vector.broadcast %cst_41 : f32 to vector<8x32xf32>
    %59 = arith.addf %58, %57 : vector<8x32xf32>
    %60 = tpu.reciprocal %59 {approx = true} : vector<8x32xf32> -> vector<8x32xf32>
    %c0_42 = arith.constant 0 : index
    %c0_43 = arith.constant 0 : index
    %61 = vector.load %arg18[%c0_42, %c0_43] : memref<8x16xf32, #tpu.memory_space<vmem>>, vector<8x16xf32>
    tpu.vector_store %arg18[%c0_42, %c0_43], %27 {strides = array<i32>} : memref<8x16xf32, #tpu.memory_space<vmem>>, vector<8x16xf32>,
    %c0_44 = arith.constant 0 : index
    %c0_45 = arith.constant 0 : index
    %62 = vector.load %arg19[%c0_44, %c0_45] : memref<8x32xf32, #tpu.memory_space<vmem>>, vector<8x32xf32>
    tpu.vector_store %arg19[%c0_44, %c0_45], %60 {strides = array<i32>} : memref<8x32xf32, #tpu.memory_space<vmem>>, vector<8x32xf32>,
    return
  }
  func.func @transform_0(%arg0: i32) -> (i32, i32) {
    %c0_i32 = arith.constant 0 : i32
    %c0_i32_0 = arith.constant 0 : i32
    return %arg0, %c0_i32 : i32, i32
  }
  func.func @transform_1(%arg0: i32) -> (i32, i32) {
    %c0_i32 = arith.constant 0 : i32
    %c0_i32_0 = arith.constant 0 : i32
    %c0_i32_1 = arith.constant 0 : i32
    return %c0_i32, %c0_i32_0 : i32, i32
  }
  func.func @transform_2(%arg0: i32) -> (i32, i32) {
    %c0_i32 = arith.constant 0 : i32
    %c0_i32_0 = arith.constant 0 : i32
    %c0_i32_1 = arith.constant 0 : i32
    return %c0_i32, %c0_i32_0 : i32, i32
  }
  func.func @transform_3(%arg0: i32) -> (i32, i32) {
    %c0_i32 = arith.constant 0 : i32
    %c0_i32_0 = arith.constant 0 : i32
    %c0_i32_1 = arith.constant 0 : i32
    return %c0_i32, %c0_i32_0 : i32, i32
  }
  func.func @transform_4(%arg0: i32) -> (i32, i32) {
    %c0_i32 = arith.constant 0 : i32
    %c0_i32_0 = arith.constant 0 : i32
    %c0_i32_1 = arith.constant 0 : i32
    return %c0_i32, %c0_i32_0 : i32, i32
  }
  func.func @transform_5(%arg0: i32) -> (i32, i32) {
    %c0_i32 = arith.constant 0 : i32
    %c0_i32_0 = arith.constant 0 : i32
    %c0_i32_1 = arith.constant 0 : i32
    return %c0_i32, %c0_i32_0 : i32, i32
  }
  func.func @transform_6(%arg0: i32) -> (i32, i32) {
    %c0_i32 = arith.constant 0 : i32
    %c0_i32_0 = arith.constant 0 : i32
    %c0_i32_1 = arith.constant 0 : i32
    return %c0_i32, %c0_i32_0 : i32, i32
  }
  func.func @transform_7(%arg0: i32) -> (i32, i32) {
    %c0_i32 = arith.constant 0 : i32
    %c0_i32_0 = arith.constant 0 : i32
    %c0_i32_1 = arith.constant 0 : i32
    return %c0_i32, %c0_i32_0 : i32, i32
  }
  func.func @transform_8(%arg0: i32) -> (i32, i32) {
    %c0_i32 = arith.constant 0 : i32
    %c0_i32_0 = arith.constant 0 : i32
    %c0_i32_1 = arith.constant 0 : i32
    return %c0_i32, %c0_i32_0 : i32, i32
  }
  func.func @transform_9(%arg0: i32) -> (i32, i32) {
    %c0_i32 = arith.constant 0 : i32
    %c0_i32_0 = arith.constant 0 : i32
    %c0_i32_1 = arith.constant 0 : i32
    return %c0_i32, %c0_i32_0 : i32, i32
  }
  func.func @transform_10(%arg0: i32) -> (i32, i32) {
    %c0_i32 = arith.constant 0 : i32
    %c0_i32_0 = arith.constant 0 : i32
    %c0_i32_1 = arith.constant 0 : i32
    return %c0_i32, %c0_i32_0 : i32, i32
  }
  func.func @transform_11(%arg0: i32) -> (i32, i32) {
    %c0_i32 = arith.constant 0 : i32
    %c0_i32_0 = arith.constant 0 : i32
    %c0_i32_1 = arith.constant 0 : i32
    return %c0_i32, %c0_i32_0 : i32, i32
  }
  func.func @transform_12(%arg0: i32) -> (i32, i32) {
    %c0_i32 = arith.constant 0 : i32
    %c0_i32_0 = arith.constant 0 : i32
    %c0_i32_1 = arith.constant 0 : i32
    return %c0_i32, %c0_i32_0 : i32, i32
  }
  func.func @transform_13(%arg0: i32) -> (i32, i32) {
    %c0_i32 = arith.constant 0 : i32
    %c0_i32_0 = arith.constant 0 : i32
    %c0_i32_1 = arith.constant 0 : i32
    return %c0_i32, %c0_i32_0 : i32, i32
  }
  func.func @transform_14(%arg0: i32) -> (i32, i32) {
    %c0_i32 = arith.constant 0 : i32
    %c0_i32_0 = arith.constant 0 : i32
    %c0_i32_1 = arith.constant 0 : i32
    return %c0_i32, %c0_i32_0 : i32, i32
  }
  func.func @transform_15(%arg0: i32) -> (i32, i32) {
    %c0_i32 = arith.constant 0 : i32
    %c0_i32_0 = arith.constant 0 : i32
    %c0_i32_1 = arith.constant 0 : i32
    return %c0_i32, %c0_i32_0 : i32, i32
  }
  func.func @transform_16(%arg0: i32) -> (i32, i32) {
    %c0_i32 = arith.constant 0 : i32
    %c0_i32_0 = arith.constant 0 : i32
    %c0_i32_1 = arith.constant 0 : i32
    return %c0_i32, %c0_i32_0 : i32, i32
  }
  func.func @transform_17(%arg0: i32) -> (i32, i32) {
    %c0_i32 = arith.constant 0 : i32
    %c0_i32_0 = arith.constant 0 : i32
    return %arg0, %c0_i32 : i32, i32
  }
  func.func @transform_18(%arg0: i32) -> (i32, i32) {
    %c0_i32 = arith.constant 0 : i32
    %c0_i32_0 = arith.constant 0 : i32
    return %arg0, %c0_i32 : i32, i32
  }
}

</mosaic_0001>

<llo_original>
// kernel: autoencoder_forward.1
$region0: #{autoencoder_forward.1}
  #allocation0 [shape = 'u32[]', space=smem, size = 0x4, offset = 0x4, fixed_abs, tag = 'smem constant byte address 0x4 - core index']
  #allocation1 [shape = 'u32[72,128]{1,0:T(1,128)}', space=vmem, size = 0x9000, scoped, tag = 'internal scratch']
  %s0 = inlined_call_operand.vmem [shape: f32[8,32], index: 0, kind: input, shape index: {}]
  %s1 = inlined_call_operand.vmem [shape: bf16[32,512], index: 1, kind: input, shape index: {}]
  %s2 = inlined_call_operand.vmem [shape: f32[1,512], index: 2, kind: input, shape index: {}]
  %s3 = inlined_call_operand.vmem [shape: bf16[512,256], index: 3, kind: input, shape index: {}]
  %s4 = inlined_call_operand.vmem [shape: f32[1,256], index: 4, kind: input, shape index: {}]
  %s5 = inlined_call_operand.vmem [shape: bf16[256,128], index: 5, kind: input, shape index: {}]
  %s6 = inlined_call_operand.vmem [shape: f32[1,128], index: 6, kind: input, shape index: {}]
  %s7 = inlined_call_operand.vmem [shape: bf16[128,16], index: 7, kind: input, shape index: {}]
  %s8 = inlined_call_operand.vmem [shape: f32[1,16], index: 8, kind: input, shape index: {}]
  %s9 = inlined_call_operand.vmem [shape: bf16[16,128], index: 9, kind: input, shape index: {}]
  %s10 = inlined_call_operand.vmem [shape: f32[1,128], index: 10, kind: input, shape index: {}]
  %s11 = inlined_call_operand.vmem [shape: bf16[128,256], index: 11, kind: input, shape index: {}]
  %s12 = inlined_call_operand.vmem [shape: f32[1,256], index: 12, kind: input, shape index: {}]
  %s13 = inlined_call_operand.vmem [shape: bf16[256,256], index: 13, kind: input, shape index: {}]
  %s14 = inlined_call_operand.vmem [shape: f32[1,256], index: 14, kind: input, shape index: {}]
  %s15 = inlined_call_operand.vmem [shape: bf16[256,32], index: 15, kind: input, shape index: {}]
  %s16 = inlined_call_operand.vmem [shape: f32[1,32], index: 16, kind: input, shape index: {}]
  %s17 = inlined_call_operand.hbm [shape: f32[8,16], index: 17, kind: output, shape index: {0}]
  %s18 = inlined_call_operand.hbm [shape: f32[8,32], index: 18, kind: output, shape index: {1}]
  %19 = xla_tuple %s17, %s18
  %s20 = sld [smem:[#allocation0]]
  $region86: #{autoencoder_forward.1} parent=0
    _
  %s22 = ssub.s32 1, %s20
  %s23 = scalar_select 0, %s22, %s20
  $region1: #{autoencoder_forward.1} parent=0
    #allocation2 [shape = 'u8[4096]{0}', space=vmem, size = 0x1000, scoped, tag = 'output window, operand 0, single buffered']
    #allocation3 [shape = 's32[1]{0}', space=sflag, size = 0x4, scoped, tag = 'scoped memory for autoencoder_forward.1']
    #allocation4 [shape = 'u8[4096]{0}', space=vmem, size = 0x1000, scoped, tag = 'output window, operand 1, single buffered']
    #allocation5 [shape = 's32[1]{0}', space=sflag, size = 0x4, scoped, tag = 'scoped memory for autoencoder_forward.1']
    %24 = vsyncpa [#allocation3], 0
    %25 = vsyncpa [#allocation5], 0
    // Predicated region
    $region2: #{autoencoder_forward.1} parent=1 // pred_check
      _
    $region3: #{autoencoder_forward.1} parent=1 // pred_check_branch
      %27 = sbr.rel (0) target = $region5
    $region4: #{autoencoder_forward.1} parent=1 // pred_region
      _
    $region5: #{autoencoder_forward.1} parent=1 // pred_fallthru
      _
    // Predicated region
    $region6: #{autoencoder_forward.1} parent=1 // pred_check
      _
    $region7: #{autoencoder_forward.1} parent=1 // pred_check_branch
      %29 = sbr.rel (0) target = $region9
    $region8: #{autoencoder_forward.1} parent=1 // pred_region
      _
    $region9: #{autoencoder_forward.1} parent=1 // pred_fallthru
      _
    // Predicated region
    $region10: #{autoencoder_forward.1} parent=1 // pred_check
      _
    $region11: #{autoencoder_forward.1} parent=1 // pred_check_branch
      %31 = sbr.rel (0) target = $region13
    $region12: #{autoencoder_forward.1} parent=1 // pred_region
      _
    $region13: #{autoencoder_forward.1} parent=1 // pred_fallthru
      _
    // Predicated region
    $region14: #{autoencoder_forward.1} parent=1 // pred_check
      _
    $region15: #{autoencoder_forward.1} parent=1 // pred_check_branch
      %33 = sbr.rel (0) target = $region17
    $region16: #{autoencoder_forward.1} parent=1 // pred_region
      _
    $region17: #{autoencoder_forward.1} parent=1 // pred_fallthru
      _
    // Predicated region
    $region18: #{autoencoder_forward.1} parent=1 // pred_check
      _
    $region19: #{autoencoder_forward.1} parent=1 // pred_check_branch
      %35 = sbr.rel (0) target = $region21
    $region20: #{autoencoder_forward.1} parent=1 // pred_region
      _
    $region21: #{autoencoder_forward.1} parent=1 // pred_fallthru
      _
    // Predicated region
    $region22: #{autoencoder_forward.1} parent=1 // pred_check
      _
    $region23: #{autoencoder_forward.1} parent=1 // pred_check_branch
      %37 = sbr.rel (0) target = $region25
    $region24: #{autoencoder_forward.1} parent=1 // pred_region
      _
    $region25: #{autoencoder_forward.1} parent=1 // pred_fallthru
      _
    // Predicated region
    $region26: #{autoencoder_forward.1} parent=1 // pred_check
      _
    $region27: #{autoencoder_forward.1} parent=1 // pred_check_branch
      %39 = sbr.rel (0) target = $region29
    $region28: #{autoencoder_forward.1} parent=1 // pred_region
      _
    $region29: #{autoencoder_forward.1} parent=1 // pred_fallthru
      _
    // Predicated region
    $region30: #{autoencoder_forward.1} parent=1 // pred_check
      _
    $region31: #{autoencoder_forward.1} parent=1 // pred_check_branch
      %41 = sbr.rel (0) target = $region33
    $region32: #{autoencoder_forward.1} parent=1 // pred_region
      _
    $region33: #{autoencoder_forward.1} parent=1 // pred_fallthru
      _
    // Predicated region
    $region34: #{autoencoder_forward.1} parent=1 // pred_check
      _
    $region35: #{autoencoder_forward.1} parent=1 // pred_check_branch
      %43 = sbr.rel (0) target = $region37
    $region36: #{autoencoder_forward.1} parent=1 // pred_region
      _
    $region37: #{autoencoder_forward.1} parent=1 // pred_fallthru
      _
    // Predicated region
    $region38: #{autoencoder_forward.1} parent=1 // pred_check
      _
    $region39: #{autoencoder_forward.1} parent=1 // pred_check_branch
      %45 = sbr.rel (0) target = $region41
    $region40: #{autoencoder_forward.1} parent=1 // pred_region
      _
    $region41: #{autoencoder_forward.1} parent=1 // pred_fallthru
      _
    // Predicated region
    $region42: #{autoencoder_forward.1} parent=1 // pred_check
      _
    $region43: #{autoencoder_forward.1} parent=1 // pred_check_branch
      %47 = sbr.rel (0) target = $region45
    $region44: #{autoencoder_forward.1} parent=1 // pred_region
      _
    $region45: #{autoencoder_forward.1} parent=1 // pred_fallthru
      _
    // Predicated region
    $region46: #{autoencoder_forward.1} parent=1 // pred_check
      _
    $region47: #{autoencoder_forward.1} parent=1 // pred_check_branch
      %49 = sbr.rel (0) target = $region49
    $region48: #{autoencoder_forward.1} parent=1 // pred_region
      _
    $region49: #{autoencoder_forward.1} parent=1 // pred_fallthru
      _
    // Predicated region
    $region50: #{autoencoder_forward.1} parent=1 // pred_check
      _
    $region51: #{autoencoder_forward.1} parent=1 // pred_check_branch
      %51 = sbr.rel (0) target = $region53
    $region52: #{autoencoder_forward.1} parent=1 // pred_region
      _
    $region53: #{autoencoder_forward.1} parent=1 // pred_fallthru
      _
    // Predicated region
    $region54: #{autoencoder_forward.1} parent=1 // pred_check
      _
    $region55: #{autoencoder_forward.1} parent=1 // pred_check_branch
      %53 = sbr.rel (0) target = $region57
    $region56: #{autoencoder_forward.1} parent=1 // pred_region
      _
    $region57: #{autoencoder_forward.1} parent=1 // pred_fallthru
      _
    // Predicated region
    $region58: #{autoencoder_forward.1} parent=1 // pred_check
      _
    $region59: #{autoencoder_forward.1} parent=1 // pred_check_branch
      %55 = sbr.rel (0) target = $region61
    $region60: #{autoencoder_forward.1} parent=1 // pred_region
      _
    $region61: #{autoencoder_forward.1} parent=1 // pred_fallthru
      _
    // Predicated region
    $region62: #{autoencoder_forward.1} parent=1 // pred_check
      _
    $region63: #{autoencoder_forward.1} parent=1 // pred_check_branch
      %57 = sbr.rel (0) target = $region65
    $region64: #{autoencoder_forward.1} parent=1 // pred_region
      _
    $region65: #{autoencoder_forward.1} parent=1 // pred_fallthru
      _
    // Predicated region
    $region66: #{autoencoder_forward.1} parent=1 // pred_check
      _
    $region67: #{autoencoder_forward.1} parent=1 // pred_check_branch
      %59 = sbr.rel (0) target = $region69
    $region68: #{autoencoder_forward.1} parent=1 // pred_region
      _
    $region69: #{autoencoder_forward.1} parent=1 // pred_fallthru
      _
    %v61 = vld [vmem:[%s0] sm:$0xff]
    %v62 = vpack.c.bf16 %v61, %v61
    %v63 = vld [vmem:[%s1] sm:$0xff]
    %v64 = vld [vmem:[%s1 + $0x8] sm:$0xff]
    %v65 = vld [vmem:[%s1 + $0x10] sm:$0xff]
    %v66 = vld [vmem:[%s1 + $0x18] sm:$0xff]
    %v67 = vld [vmem:[%s1 + $0x20] sm:$0xff]
    %v68 = vld [vmem:[%s1 + $0x28] sm:$0xff]
    %v69 = vld [vmem:[%s1 + $0x30] sm:$0xff]
    %v70 = vld [vmem:[%s1 + $0x38] sm:$0xff]
    %v71 = vld [vmem:[%s2] sm:$0xf]
    %v73 = vperm.slane %v71, 0
    %v74 = vperm.slane %v71, 1
    %v75 = vperm.slane %v71, 2
    %v76 = vperm.slane %v71, 3
    %v89 = vunpack.c.l.b16 %v63
    %v90 = vunpack.c.h.b16 %v63
    %v91 = vunpack.c.l.b16 %v64
    %v92 = vunpack.c.h.b16 %v64
    %v93 = vunpack.c.l.b16 %v65
    %v94 = vunpack.c.h.b16 %v65
    %v95 = vunpack.c.l.b16 %v66
    %v96 = vunpack.c.h.b16 %v66
    %v97 = vunpack.c.l.b16 %v67
    %v98 = vunpack.c.h.b16 %v67
    %v99 = vunpack.c.l.b16 %v68
    %v100 = vunpack.c.h.b16 %v68
    %v101 = vunpack.c.l.b16 %v69
    %v102 = vunpack.c.h.b16 %v69
    %v103 = vunpack.c.l.b16 %v70
    %v104 = vunpack.c.h.b16 %v70
    %v105 = vpack.c.b16 %v93, %v89
    %v106 = vpack.c.b16 %v94, %v90
    %v107 = vpack.c.b16 %v95, %v91
    %v108 = vpack.c.b16 %v96, %v92
    %v109 = vpack.c.b16 %v101, %v97
    %v110 = vpack.c.b16 %v102, %v98
    %v111 = vpack.c.b16 %v103, %v99
    %v112 = vpack.c.b16 %v104, %v100
    %vm121 = vcmask 261120
    %v123 = vsel %vm121, %v62, 0
    %125 = vmatpush.bf16.msra.mxu0 0
    %126 = vmatpush.bf16.msra.mxu0 0
    %127 = vmatpush.bf16.msra.mxu0 0
    %128 = vmatpush.bf16.msra.mxu0 0
    %129 = vmatpush.bf16.msra.mxu0 0
    %130 = vmatpush.bf16.msra.mxu0 0
    %131 = vmatpush.bf16.msra.mxu0 %v109
    %132 = vmatpush.bf16.msra.mxu0 %v105
    %133 = vmatmul.bf16.gmra.mxu0 %v123
    %v134 = vpop.f32.mrf.mxu0
    %v135 = vadd.f32 %v73, %v134
    %v136 = vpop.f32.mrf.mxu0
    %137 = vdwg.mxu0
    %138 = vmatpush.bf16.msra.mxu0 0
    %139 = vmatpush.bf16.msra.mxu0 0
    %140 = vmatpush.bf16.msra.mxu0 0
    %141 = vmatpush.bf16.msra.mxu0 0
    %142 = vmatpush.bf16.msra.mxu0 0
    %143 = vmatpush.bf16.msra.mxu0 0
    %144 = vmatpush.bf16.msra.mxu0 %v110
    %145 = vmatpush.bf16.msra.mxu0 %v106
    %146 = vmatmul.bf16.gmra.mxu0 %v123
    %v147 = vpop.f32.mrf.mxu0
    %v148 = vadd.f32 %v74, %v147
    %v149 = vpop.f32.mrf.mxu0
    %150 = vdwg.mxu0
    %151 = vmatpush.bf16.msra.mxu0 0
    %152 = vmatpush.bf16.msra.mxu0 0
    %153 = vmatpush.bf16.msra.mxu0 0
    %154 = vmatpush.bf16.msra.mxu0 0
    %155 = vmatpush.bf16.msra.mxu0 0
    %156 = vmatpush.bf16.msra.mxu0 0
    %157 = vmatpush.bf16.msra.mxu0 %v111
    %158 = vmatpush.bf16.msra.mxu0 %v107
    %159 = vmatmul.bf16.gmra.mxu0 %v123
    %v160 = vpop.f32.mrf.mxu0
    %v161 = vadd.f32 %v75, %v160
    %v162 = vpop.f32.mrf.mxu0
    %163 = vdwg.mxu0
    %164 = vmatpush.bf16.msra.mxu0 0
    %165 = vmatpush.bf16.msra.mxu0 0
    %166 = vmatpush.bf16.msra.mxu0 0
    %167 = vmatpush.bf16.msra.mxu0 0
    %168 = vmatpush.bf16.msra.mxu0 0
    %169 = vmatpush.bf16.msra.mxu0 0
    %170 = vmatpush.bf16.msra.mxu0 %v112
    %171 = vmatpush.bf16.msra.mxu0 %v108
    %172 = vmatmul.bf16.gmra.mxu0 %v123
    %v173 = vpop.f32.mrf.mxu0
    %v174 = vadd.f32 %v76, %v173
    %v175 = vpop.f32.mrf.mxu0
    %176 = vdwg.mxu0
    %v177 = vtanh.pop %v135
    %v178 = vtanh.pop %v148
    %v179 = vtanh.pop %v161
    %v180 = vtanh.pop %v174
    %v181 = vpack.c.bf16 %v177, %v177
    %v182 = vpack.c.bf16 %v178, %v178
    %v183 = vpack.c.bf16 %v179, %v179
    %v184 = vpack.c.bf16 %v180, %v180
    %v185 = vld [vmem:[%s3] sm:$0xff]
    %v186 = vld [vmem:[%s3 + $0x8] sm:$0xff]
    %v187 = vld [vmem:[%s3 + $0x10] sm:$0xff]
    %v188 = vld [vmem:[%s3 + $0x18] sm:$0xff]
    %v189 = vld [vmem:[%s3 + $0x20] sm:$0xff]
    %v190 = vld [vmem:[%s3 + $0x28] sm:$0xff]
    %v191 = vld [vmem:[%s3 + $0x30] sm:$0xff]
    %v192 = vld [vmem:[%s3 + $0x38] sm:$0xff]
    %v193 = vld [vmem:[%s3 + $0x40] sm:$0xff]
    %v194 = vld [vmem:[%s3 + $0x48] sm:$0xff]
    %v195 = vld [vmem:[%s3 + $0x50] sm:$0xff]
    %v196 = vld [vmem:[%s3 + $0x58] sm:$0xff]
    %v197 = vld [vmem:[%s3 + $0x60] sm:$0xff]
    %v198 = vld [vmem:[%s3 + $0x68] sm:$0xff]
    %v199 = vld [vmem:[%s3 + $0x70] sm:$0xff]
    %v200 = vld [vmem:[%s3 + $0x78] sm:$0xff]
    %v201 = vld [vmem:[%s3 + $0x80] sm:$0xff]
    %v202 = vld [vmem:[%s3 + $0x88] sm:$0xff]
    %v203 = vld [vmem:[%s3 + $0x90] sm:$0xff]
    %v204 = vld [vmem:[%s3 + $0x98] sm:$0xff]
    %v205 = vld [vmem:[%s3 + $0xa0] sm:$0xff]
    %v206 = vld [vmem:[%s3 + $0xa8] sm:$0xff]
    %v207 = vld [vmem:[%s3 + $0xb0] sm:$0xff]
    %v208 = vld [vmem:[%s3 + $0xb8] sm:$0xff]
    %v209 = vld [vmem:[%s3 + $0xc0] sm:$0xff]
    %v210 = vld [vmem:[%s3 + $0xc8] sm:$0xff]
    %v211 = vld [vmem:[%s3 + $0xd0] sm:$0xff]
    %v212 = vld [vmem:[%s3 + $0xd8] sm:$0xff]
    %v213 = vld [vmem:[%s3 + $0xe0] sm:$0xff]
    %v214 = vld [vmem:[%s3 + $0xe8] sm:$0xff]
    %v215 = vld [vmem:[%s3 + $0xf0] sm:$0xff]
    %v216 = vld [vmem:[%s3 + $0xf8] sm:$0xff]
    %v217 = vld [vmem:[%s3 + $0x100] sm:$0xff]
    %v218 = vld [vmem:[%s3 + $0x108] sm:$0xff]
    %v219 = vld [vmem:[%s3 + $0x110] sm:$0xff]
    %v220 = vld [vmem:[%s3 + $0x118] sm:$0xff]
    %v221 = vld [vmem:[%s3 + $0x120] sm:$0xff]
    %v222 = vld [vmem:[%s3 + $0x128] sm:$0xff]
    %v223 = vld [vmem:[%s3 + $0x130] sm:$0xff]
    %v224 = vld [vmem:[%s3 + $0x138] sm:$0xff]
    %v225 = vld [vmem:[%s3 + $0x140] sm:$0xff]
    %v226 = vld [vmem:[%s3 + $0x148] sm:$0xff]
    %v227 = vld [vmem:[%s3 + $0x150] sm:$0xff]
    %v228 = vld [vmem:[%s3 + $0x158] sm:$0xff]
    %v229 = vld [vmem:[%s3 + $0x160] sm:$0xff]
    %v230 = vld [vmem:[%s3 + $0x168] sm:$0xff]
    %v231 = vld [vmem:[%s3 + $0x170] sm:$0xff]
    %v232 = vld [vmem:[%s3 + $0x178] sm:$0xff]
    %v233 = vld [vmem:[%s3 + $0x180] sm:$0xff]
    %v234 = vld [vmem:[%s3 + $0x188] sm:$0xff]
    %v235 = vld [vmem:[%s3 + $0x190] sm:$0xff]
    %v236 = vld [vmem:[%s3 + $0x198] sm:$0xff]
    %v237 = vld [vmem:[%s3 + $0x1a0] sm:$0xff]
    %v238 = vld [vmem:[%s3 + $0x1a8] sm:$0xff]
    %v239 = vld [vmem:[%s3 + $0x1b0] sm:$0xff]
    %v240 = vld [vmem:[%s3 + $0x1b8] sm:$0xff]
    %v241 = vld [vmem:[%s3 + $0x1c0] sm:$0xff]
    %v242 = vld [vmem:[%s3 + $0x1c8] sm:$0xff]
    %v243 = vld [vmem:[%s3 + $0x1d0] sm:$0xff]
    %v244 = vld [vmem:[%s3 + $0x1d8] sm:$0xff]
    %v245 = vld [vmem:[%s3 + $0x1e0] sm:$0xff]
    %v246 = vld [vmem:[%s3 + $0x1e8] sm:$0xff]
    %v247 = vld [vmem:[%s3 + $0x1f0] sm:$0xff]
    %v248 = vld [vmem:[%s3 + $0x1f8] sm:$0xff]
    %v249 = vld [vmem:[%s4] sm:$0x3]
    %v251 = vperm.slane %v249, 0
    %v252 = vperm.slane %v249, 1
    %v319 = vunpack.c.l.b16 %v185
    %v320 = vunpack.c.h.b16 %v185
    %v321 = vunpack.c.l.b16 %v186
    %v322 = vunpack.c.h.b16 %v186
    %v323 = vunpack.c.l.b16 %v187
    %v324 = vunpack.c.h.b16 %v187
    %v325 = vunpack.c.l.b16 %v188
    %v326 = vunpack.c.h.b16 %v188
    %v327 = vunpack.c.l.b16 %v189
    %v328 = vunpack.c.h.b16 %v189
    %v329 = vunpack.c.l.b16 %v190
    %v330 = vunpack.c.h.b16 %v190
    %v331 = vunpack.c.l.b16 %v191
    %v332 = vunpack.c.h.b16 %v191
    %v333 = vunpack.c.l.b16 %v192
    %v334 = vunpack.c.h.b16 %v192
    %v335 = vunpack.c.l.b16 %v193
    %v336 = vunpack.c.h.b16 %v193
    %v337 = vunpack.c.l.b16 %v194
    %v338 = vunpack.c.h.b16 %v194
    %v339 = vunpack.c.l.b16 %v195
    %v340 = vunpack.c.h.b16 %v195
    %v341 = vunpack.c.l.b16 %v196
    %v342 = vunpack.c.h.b16 %v196
    %v343 = vunpack.c.l.b16 %v197
    %v344 = vunpack.c.h.b16 %v197
    %v345 = vunpack.c.l.b16 %v198
    %v346 = vunpack.c.h.b16 %v198
    %v347 = vunpack.c.l.b16 %v199
    %v348 = vunpack.c.h.b16 %v199
    %v349 = vunpack.c.l.b16 %v200
    %v350 = vunpack.c.h.b16 %v200
    %v351 = vunpack.c.l.b16 %v201
    %v352 = vunpack.c.h.b16 %v201
    %v353 = vunpack.c.l.b16 %v202
    %v354 = vunpack.c.h.b16 %v202
    %v355 = vunpack.c.l.b16 %v203
    %v356 = vunpack.c.h.b16 %v203
    %v357 = vunpack.c.l.b16 %v204
    %v358 = vunpack.c.h.b16 %v204
    %v359 = vunpack.c.l.b16 %v205
    %v360 = vunpack.c.h.b16 %v205
    %v361 = vunpack.c.l.b16 %v206
    %v362 = vunpack.c.h.b16 %v206
    %v363 = vunpack.c.l.b16 %v207
    %v364 = vunpack.c.h.b16 %v207
    %v365 = vunpack.c.l.b16 %v208
    %v366 = vunpack.c.h.b16 %v208
    %v367 = vunpack.c.l.b16 %v209
    %v368 = vunpack.c.h.b16 %v209
    %v369 = vunpack.c.l.b16 %v210
    %v370 = vunpack.c.h.b16 %v210
    %v371 = vunpack.c.l.b16 %v211
    %v372 = vunpack.c.h.b16 %v211
    %v373 = vunpack.c.l.b16 %v212
    %v374 = vunpack.c.h.b16 %v212
    %v375 = vunpack.c.l.b16 %v213
    %v376 = vunpack.c.h.b16 %v213
    %v377 = vunpack.c.l.b16 %v214
    %v378 = vunpack.c.h.b16 %v214
    %v379 = vunpack.c.l.b16 %v215
    %v380 = vunpack.c.h.b16 %v215
    %v381 = vunpack.c.l.b16 %v216
    %v382 = vunpack.c.h.b16 %v216
    %v383 = vunpack.c.l.b16 %v217
    %v384 = vunpack.c.h.b16 %v217
    %v385 = vunpack.c.l.b16 %v218
    %v386 = vunpack.c.h.b16 %v218
    %v387 = vunpack.c.l.b16 %v219
    %v388 = vunpack.c.h.b16 %v219
    %v389 = vunpack.c.l.b16 %v220
    %v390 = vunpack.c.h.b16 %v220
    %v391 = vunpack.c.l.b16 %v221
    %v392 = vunpack.c.h.b16 %v221
    %v393 = vunpack.c.l.b16 %v222
    %v394 = vunpack.c.h.b16 %v222
    %v395 = vunpack.c.l.b16 %v223
    %v396 = vunpack.c.h.b16 %v223
    %v397 = vunpack.c.l.b16 %v224
    %v398 = vunpack.c.h.b16 %v224
    %v399 = vunpack.c.l.b16 %v225
    %v400 = vunpack.c.h.b16 %v225
    %v401 = vunpack.c.l.b16 %v226
    %v402 = vunpack.c.h.b16 %v226
    %v403 = vunpack.c.l.b16 %v227
    %v404 = vunpack.c.h.b16 %v227
    %v405 = vunpack.c.l.b16 %v228
    %v406 = vunpack.c.h.b16 %v228
    %v407 = vunpack.c.l.b16 %v229
    %v408 = vunpack.c.h.b16 %v229
    %v409 = vunpack.c.l.b16 %v230
    %v410 = vunpack.c.h.b16 %v230
    %v411 = vunpack.c.l.b16 %v231
    %v412 = vunpack.c.h.b16 %v231
    %v413 = vunpack.c.l.b16 %v232
    %v414 = vunpack.c.h.b16 %v232
    %v415 = vunpack.c.l.b16 %v233
    %v416 = vunpack.c.h.b16 %v233
    %v417 = vunpack.c.l.b16 %v234
    %v418 = vunpack.c.h.b16 %v234
    %v419 = vunpack.c.l.b16 %v235
    %v420 = vunpack.c.h.b16 %v235
    %v421 = vunpack.c.l.b16 %v236
    %v422 = vunpack.c.h.b16 %v236
    %v423 = vunpack.c.l.b16 %v237
    %v424 = vunpack.c.h.b16 %v237
    %v425 = vunpack.c.l.b16 %v238
    %v426 = vunpack.c.h.b16 %v238
    %v427 = vunpack.c.l.b16 %v239
    %v428 = vunpack.c.h.b16 %v239
    %v429 = vunpack.c.l.b16 %v240
    %v430 = vunpack.c.h.b16 %v240
    %v431 = vunpack.c.l.b16 %v241
    %v432 = vunpack.c.h.b16 %v241
    %v433 = vunpack.c.l.b16 %v242
    %v434 = vunpack.c.h.b16 %v242
    %v435 = vunpack.c.l.b16 %v243
    %v436 = vunpack.c.h.b16 %v243
    %v437 = vunpack.c.l.b16 %v244
    %v438 = vunpack.c.h.b16 %v244
    %v439 = vunpack.c.l.b16 %v245
    %v440 = vunpack.c.h.b16 %v245
    %v441 = vunpack.c.l.b16 %v246
    %v442 = vunpack.c.h.b16 %v246
    %v443 = vunpack.c.l.b16 %v247
    %v444 = vunpack.c.h.b16 %v247
    %v445 = vunpack.c.l.b16 %v248
    %v446 = vunpack.c.h.b16 %v248
    %v447 = vpack.c.b16 %v321, %v319
    %v448 = vpack.c.b16 %v322, %v320
    %v449 = vpack.c.b16 %v325, %v323
    %v450 = vpack.c.b16 %v326, %v324
    %v451 = vpack.c.b16 %v329, %v327
    %v452 = vpack.c.b16 %v330, %v328
    %v453 = vpack.c.b16 %v333, %v331
    %v454 = vpack.c.b16 %v334, %v332
    %v455 = vpack.c.b16 %v337, %v335
    %v456 = vpack.c.b16 %v338, %v336
    %v457 = vpack.c.b16 %v341, %v339
    %v458 = vpack.c.b16 %v342, %v340
    %v459 = vpack.c.b16 %v345, %v343
    %v460 = vpack.c.b16 %v346, %v344
    %v461 = vpack.c.b16 %v349, %v347
    %v462 = vpack.c.b16 %v350, %v348
    %v463 = vpack.c.b16 %v353, %v351
    %v464 = vpack.c.b16 %v354, %v352
    %v465 = vpack.c.b16 %v357, %v355
    %v466 = vpack.c.b16 %v358, %v356
    %v467 = vpack.c.b16 %v361, %v359
    %v468 = vpack.c.b16 %v362, %v360
    %v469 = vpack.c.b16 %v365, %v363
    %v470 = vpack.c.b16 %v366, %v364
    %v471 = vpack.c.b16 %v369, %v367
    %v472 = vpack.c.b16 %v370, %v368
    %v473 = vpack.c.b16 %v373, %v371
    %v474 = vpack.c.b16 %v374, %v372
    %v475 = vpack.c.b16 %v377, %v375
    %v476 = vpack.c.b16 %v378, %v376
    %v477 = vpack.c.b16 %v381, %v379
    %v478 = vpack.c.b16 %v382, %v380
    %v479 = vpack.c.b16 %v385, %v383
    %v480 = vpack.c.b16 %v386, %v384
    %v481 = vpack.c.b16 %v389, %v387
    %v482 = vpack.c.b16 %v390, %v388
    %v483 = vpack.c.b16 %v393, %v391
    %v484 = vpack.c.b16 %v394, %v392
    %v485 = vpack.c.b16 %v397, %v395
    %v486 = vpack.c.b16 %v398, %v396
    %v487 = vpack.c.b16 %v401, %v399
    %v488 = vpack.c.b16 %v402, %v400
    %v489 = vpack.c.b16 %v405, %v403
    %v490 = vpack.c.b16 %v406, %v404
    %v491 = vpack.c.b16 %v409, %v407
    %v492 = vpack.c.b16 %v410, %v408
    %v493 = vpack.c.b16 %v413, %v411
    %v494 = vpack.c.b16 %v414, %v412
    %v495 = vpack.c.b16 %v417, %v415
    %v496 = vpack.c.b16 %v418, %v416
    %v497 = vpack.c.b16 %v421, %v419
    %v498 = vpack.c.b16 %v422, %v420
    %v499 = vpack.c.b16 %v425, %v423
    %v500 = vpack.c.b16 %v426, %v424
    %v501 = vpack.c.b16 %v429, %v427
    %v502 = vpack.c.b16 %v430, %v428
    %v503 = vpack.c.b16 %v433, %v431
    %v504 = vpack.c.b16 %v434, %v432
    %v505 = vpack.c.b16 %v437, %v435
    %v506 = vpack.c.b16 %v438, %v436
    %v507 = vpack.c.b16 %v441, %v439
    %v508 = vpack.c.b16 %v442, %v440
    %v509 = vpack.c.b16 %v445, %v443
    %v510 = vpack.c.b16 %v446, %v444
    %575 = vmatpush.bf16.msra.mxu0 %v461
    %576 = vmatpush.bf16.msra.mxu0 %v459
    %577 = vmatpush.bf16.msra.mxu0 %v457
    %578 = vmatpush.bf16.msra.mxu0 %v455
    %579 = vmatpush.bf16.msra.mxu0 %v453
    %580 = vmatpush.bf16.msra.mxu0 %v451
    %581 = vmatpush.bf16.msra.mxu0 %v449
    %582 = vmatpush.bf16.msra.mxu0 %v447
    %583 = vmatmul.bf16.gmra.mxu0 %v181
    %v584 = vpop.f32.mrf.mxu0
    %v585 = vadd.f32 %v251, %v584
    %v586 = vpop.f32.mrf.mxu0
    %587 = vdwg.mxu0
    %588 = vmatpush.bf16.msra.mxu0 %v477
    %589 = vmatpush.bf16.msra.mxu0 %v475
    %590 = vmatpush.bf16.msra.mxu0 %v473
    %591 = vmatpush.bf16.msra.mxu0 %v471
    %592 = vmatpush.bf16.msra.mxu0 %v469
    %593 = vmatpush.bf16.msra.mxu0 %v467
    %594 = vmatpush.bf16.msra.mxu0 %v465
    %595 = vmatpush.bf16.msra.mxu0 %v463
    %596 = vmatmul.bf16.gmra.mxu0 %v182
    %v597 = vpop.f32.mrf.mxu0
    %v598 = vadd.f32 %v585, %v597
    %v599 = vpop.f32.mrf.mxu0
    %600 = vdwg.mxu0
    %601 = vmatpush.bf16.msra.mxu0 %v493
    %602 = vmatpush.bf16.msra.mxu0 %v491
    %603 = vmatpush.bf16.msra.mxu0 %v489
    %604 = vmatpush.bf16.msra.mxu0 %v487
    %605 = vmatpush.bf16.msra.mxu0 %v485
    %606 = vmatpush.bf16.msra.mxu0 %v483
    %607 = vmatpush.bf16.msra.mxu0 %v481
    %608 = vmatpush.bf16.msra.mxu0 %v479
    %609 = vmatmul.bf16.gmra.mxu0 %v183
    %v610 = vpop.f32.mrf.mxu0
    %v611 = vadd.f32 %v598, %v610
    %v612 = vpop.f32.mrf.mxu0
    %613 = vdwg.mxu0
    %614 = vmatpush.bf16.msra.mxu0 %v509
    %615 = vmatpush.bf16.msra.mxu0 %v507
    %616 = vmatpush.bf16.msra.mxu0 %v505
    %617 = vmatpush.bf16.msra.mxu0 %v503
    %618 = vmatpush.bf16.msra.mxu0 %v501
    %619 = vmatpush.bf16.msra.mxu0 %v499
    %620 = vmatpush.bf16.msra.mxu0 %v497
    %621 = vmatpush.bf16.msra.mxu0 %v495
    %622 = vmatmul.bf16.gmra.mxu0 %v184
    %v623 = vpop.f32.mrf.mxu0
    %v624 = vadd.f32 %v611, %v623
    %v625 = vpop.f32.mrf.mxu0
    %626 = vdwg.mxu0
    %627 = vmatpush.bf16.msra.mxu0 %v462
    %628 = vmatpush.bf16.msra.mxu0 %v460
    %629 = vmatpush.bf16.msra.mxu0 %v458
    %630 = vmatpush.bf16.msra.mxu0 %v456
    %631 = vmatpush.bf16.msra.mxu0 %v454
    %632 = vmatpush.bf16.msra.mxu0 %v452
    %633 = vmatpush.bf16.msra.mxu0 %v450
    %634 = vmatpush.bf16.msra.mxu0 %v448
    %635 = vmatmul.bf16.gmra.mxu0 %v181
    %v636 = vpop.f32.mrf.mxu0
    %v637 = vadd.f32 %v252, %v636
    %v638 = vpop.f32.mrf.mxu0
    %639 = vdwg.mxu0
    %640 = vmatpush.bf16.msra.mxu0 %v478
    %641 = vmatpush.bf16.msra.mxu0 %v476
    %642 = vmatpush.bf16.msra.mxu0 %v474
    %643 = vmatpush.bf16.msra.mxu0 %v472
    %644 = vmatpush.bf16.msra.mxu0 %v470
    %645 = vmatpush.bf16.msra.mxu0 %v468
    %646 = vmatpush.bf16.msra.mxu0 %v466
    %647 = vmatpush.bf16.msra.mxu0 %v464
    %648 = vmatmul.bf16.gmra.mxu0 %v182
    %v649 = vpop.f32.mrf.mxu0
    %v650 = vadd.f32 %v637, %v649
    %v651 = vpop.f32.mrf.mxu0
    %652 = vdwg.mxu0
    %653 = vmatpush.bf16.msra.mxu0 %v494
    %654 = vmatpush.bf16.msra.mxu0 %v492
    %655 = vmatpush.bf16.msra.mxu0 %v490
    %656 = vmatpush.bf16.msra.mxu0 %v488
    %657 = vmatpush.bf16.msra.mxu0 %v486
    %658 = vmatpush.bf16.msra.mxu0 %v484
    %659 = vmatpush.bf16.msra.mxu0 %v482
    %660 = vmatpush.bf16.msra.mxu0 %v480
    %661 = vmatmul.bf16.gmra.mxu0 %v183
    %v662 = vpop.f32.mrf.mxu0
    %v663 = vadd.f32 %v650, %v662
    %v664 = vpop.f32.mrf.mxu0
    %665 = vdwg.mxu0
    %666 = vmatpush.bf16.msra.mxu0 %v510
    %667 = vmatpush.bf16.msra.mxu0 %v508
    %668 = vmatpush.bf16.msra.mxu0 %v506
    %669 = vmatpush.bf16.msra.mxu0 %v504
    %670 = vmatpush.bf16.msra.mxu0 %v502
    %671 = vmatpush.bf16.msra.mxu0 %v500
    %672 = vmatpush.bf16.msra.mxu0 %v498
    %673 = vmatpush.bf16.msra.mxu0 %v496
    %674 = vmatmul.bf16.gmra.mxu0 %v184
    %v675 = vpop.f32.mrf.mxu0
    %v676 = vadd.f32 %v663, %v675
    %v677 = vpop.f32.mrf.mxu0
    %678 = vdwg.mxu0
    %v679 = vtanh.pop %v624
    %v680 = vtanh.pop %v676
    %v681 = vpack.c.bf16 %v679, %v679
    %v682 = vpack.c.bf16 %v680, %v680
    %v683 = vld [vmem:[%s5] sm:$0xf]
    %v684 = vld [vmem:[%s5 + $0x4] sm:$0xf]
    %v685 = vld [vmem:[%s5 + $0x8] sm:$0xf]
    %v686 = vld [vmem:[%s5 + $0xc] sm:$0xf]
    %v687 = vld [vmem:[%s5 + $0x10] sm:$0xf]
    %v688 = vld [vmem:[%s5 + $0x14] sm:$0xf]
    %v689 = vld [vmem:[%s5 + $0x18] sm:$0xf]
    %v690 = vld [vmem:[%s5 + $0x1c] sm:$0xf]
    %v691 = vld [vmem:[%s5 + $0x20] sm:$0xf]
    %v692 = vld [vmem:[%s5 + $0x24] sm:$0xf]
    %v693 = vld [vmem:[%s5 + $0x28] sm:$0xf]
    %v694 = vld [vmem:[%s5 + $0x2c] sm:$0xf]
    %v695 = vld [vmem:[%s5 + $0x30] sm:$0xf]
    %v696 = vld [vmem:[%s5 + $0x34] sm:$0xf]
    %v697 = vld [vmem:[%s5 + $0x38] sm:$0xf]
    %v698 = vld [vmem:[%s5 + $0x3c] sm:$0xf]
    %v699 = vld [vmem:[%s5 + $0x40] sm:$0xf]
    %v700 = vld [vmem:[%s5 + $0x44] sm:$0xf]
    %v701 = vld [vmem:[%s5 + $0x48] sm:$0xf]
    %v702 = vld [vmem:[%s5 + $0x4c] sm:$0xf]
    %v703 = vld [vmem:[%s5 + $0x50] sm:$0xf]
    %v704 = vld [vmem:[%s5 + $0x54] sm:$0xf]
    %v705 = vld [vmem:[%s5 + $0x58] sm:$0xf]
    %v706 = vld [vmem:[%s5 + $0x5c] sm:$0xf]
    %v707 = vld [vmem:[%s5 + $0x60] sm:$0xf]
    %v708 = vld [vmem:[%s5 + $0x64] sm:$0xf]
    %v709 = vld [vmem:[%s5 + $0x68] sm:$0xf]
    %v710 = vld [vmem:[%s5 + $0x6c] sm:$0xf]
    %v711 = vld [vmem:[%s5 + $0x70] sm:$0xf]
    %v712 = vld [vmem:[%s5 + $0x74] sm:$0xf]
    %v713 = vld [vmem:[%s5 + $0x78] sm:$0xf]
    %v714 = vld [vmem:[%s5 + $0x7c] sm:$0xf]
    %v715 = vld [vmem:[%s6] sm:$0x1]
    %v717 = vperm.slane %v715, 0
    %v751 = vunpack.c.l.b16 %v683
    %v752 = vunpack.c.l.b16 %v684
    %v753 = vunpack.c.l.b16 %v685
    %v754 = vunpack.c.l.b16 %v686
    %v755 = vunpack.c.l.b16 %v687
    %v756 = vunpack.c.l.b16 %v688
    %v757 = vunpack.c.l.b16 %v689
    %v758 = vunpack.c.l.b16 %v690
    %v759 = vunpack.c.l.b16 %v691
    %v760 = vunpack.c.l.b16 %v692
    %v761 = vunpack.c.l.b16 %v693
    %v762 = vunpack.c.l.b16 %v694
    %v763 = vunpack.c.l.b16 %v695
    %v764 = vunpack.c.l.b16 %v696
    %v765 = vunpack.c.l.b16 %v697
    %v766 = vunpack.c.l.b16 %v698
    %v767 = vunpack.c.l.b16 %v699
    %v768 = vunpack.c.l.b16 %v700
    %v769 = vunpack.c.l.b16 %v701
    %v770 = vunpack.c.l.b16 %v702
    %v771 = vunpack.c.l.b16 %v703
    %v772 = vunpack.c.l.b16 %v704
    %v773 = vunpack.c.l.b16 %v705
    %v774 = vunpack.c.l.b16 %v706
    %v775 = vunpack.c.l.b16 %v707
    %v776 = vunpack.c.l.b16 %v708
    %v777 = vunpack.c.l.b16 %v709
    %v778 = vunpack.c.l.b16 %v710
    %v779 = vunpack.c.l.b16 %v711
    %v780 = vunpack.c.l.b16 %v712
    %v781 = vunpack.c.l.b16 %v713
    %v782 = vunpack.c.l.b16 %v714
    %v783 = vpack.c.b16 %v752, %v751
    %v784 = vpack.c.b16 %v754, %v753
    %v785 = vpack.c.b16 %v756, %v755
    %v786 = vpack.c.b16 %v758, %v757
    %v787 = vpack.c.b16 %v760, %v759
    %v788 = vpack.c.b16 %v762, %v761
    %v789 = vpack.c.b16 %v764, %v763
    %v790 = vpack.c.b16 %v766, %v765
    %v791 = vpack.c.b16 %v768, %v767
    %v792 = vpack.c.b16 %v770, %v769
    %v793 = vpack.c.b16 %v772, %v771
    %v794 = vpack.c.b16 %v774, %v773
    %v795 = vpack.c.b16 %v776, %v775
    %v796 = vpack.c.b16 %v778, %v777
    %v797 = vpack.c.b16 %v780, %v779
    %v798 = vpack.c.b16 %v782, %v781
    %815 = vmatpush.bf16.msra.mxu0 %v790
    %816 = vmatpush.bf16.msra.mxu0 %v789
    %817 = vmatpush.bf16.msra.mxu0 %v788
    %818 = vmatpush.bf16.msra.mxu0 %v787
    %819 = vmatpush.bf16.msra.mxu0 %v786
    %820 = vmatpush.bf16.msra.mxu0 %v785
    %821 = vmatpush.bf16.msra.mxu0 %v784
    %822 = vmatpush.bf16.msra.mxu0 %v783
    %823 = vmatmul.bf16.gmra.mxu0 %v681
    %v824 = vpop.f32.mrf.mxu0
    %v825 = vadd.f32 %v717, %v824
    %v826 = vpop.f32.mrf.mxu0
    %827 = vdwg.mxu0
    %828 = vmatpush.bf16.msra.mxu0 %v798
    %829 = vmatpush.bf16.msra.mxu0 %v797
    %830 = vmatpush.bf16.msra.mxu0 %v796
    %831 = vmatpush.bf16.msra.mxu0 %v795
    %832 = vmatpush.bf16.msra.mxu0 %v794
    %833 = vmatpush.bf16.msra.mxu0 %v793
    %834 = vmatpush.bf16.msra.mxu0 %v792
    %835 = vmatpush.bf16.msra.mxu0 %v791
    %836 = vmatmul.bf16.gmra.mxu0 %v682
    %v837 = vpop.f32.mrf.mxu0
    %v838 = vadd.f32 %v825, %v837
    %v839 = vpop.f32.mrf.mxu0
    %840 = vdwg.mxu0
    %v841 = vtanh.pop %v838
    %v842 = vpack.c.bf16 %v841, %v841
    %v843 = vld [vmem:[%s7] sm:$0xf]
    %v844 = vld [vmem:[%s7 + $0x4] sm:$0xf]
    %v845 = vld [vmem:[%s7 + $0x8] sm:$0xf]
    %v846 = vld [vmem:[%s7 + $0xc] sm:$0xf]
    %v847 = vld [vmem:[%s7 + $0x10] sm:$0xf]
    %v848 = vld [vmem:[%s7 + $0x14] sm:$0xf]
    %v849 = vld [vmem:[%s7 + $0x18] sm:$0xf]
    %v850 = vld [vmem:[%s7 + $0x1c] sm:$0xf]
    %v851 = vld [vmem:[%s7 + $0x20] sm:$0xf]
    %v852 = vld [vmem:[%s7 + $0x24] sm:$0xf]
    %v853 = vld [vmem:[%s7 + $0x28] sm:$0xf]
    %v854 = vld [vmem:[%s7 + $0x2c] sm:$0xf]
    %v855 = vld [vmem:[%s7 + $0x30] sm:$0xf]
    %v856 = vld [vmem:[%s7 + $0x34] sm:$0xf]
    %v857 = vld [vmem:[%s7 + $0x38] sm:$0xf]
    %v858 = vld [vmem:[%s7 + $0x3c] sm:$0xf]
    %v859 = vld [vmem:[%s8] sm:$0x1]
    %v861 = vperm.slane %v859, 0
    %v879 = vunpack.c.l.b16 %v843
    %v880 = vunpack.c.l.b16 %v844
    %v881 = vunpack.c.l.b16 %v845
    %v882 = vunpack.c.l.b16 %v846
    %v883 = vunpack.c.l.b16 %v847
    %v884 = vunpack.c.l.b16 %v848
    %v885 = vunpack.c.l.b16 %v849
    %v886 = vunpack.c.l.b16 %v850
    %v887 = vunpack.c.l.b16 %v851
    %v888 = vunpack.c.l.b16 %v852
    %v889 = vunpack.c.l.b16 %v853
    %v890 = vunpack.c.l.b16 %v854
    %v891 = vunpack.c.l.b16 %v855
    %v892 = vunpack.c.l.b16 %v856
    %v893 = vunpack.c.l.b16 %v857
    %v894 = vunpack.c.l.b16 %v858
    %v895 = vpack.c.b16 %v880, %v879
    %v896 = vpack.c.b16 %v882, %v881
    %v897 = vpack.c.b16 %v884, %v883
    %v898 = vpack.c.b16 %v886, %v885
    %v899 = vpack.c.b16 %v888, %v887
    %v900 = vpack.c.b16 %v890, %v889
    %v901 = vpack.c.b16 %v892, %v891
    %v902 = vpack.c.b16 %v894, %v893
    %911 = vmatpush.bf16.msra.mxu0 %v902
    %912 = vmatpush.bf16.msra.mxu0 %v901
    %913 = vmatpush.bf16.msra.mxu0 %v900
    %914 = vmatpush.bf16.msra.mxu0 %v899
    %915 = vmatpush.bf16.msra.mxu0 %v898
    %916 = vmatpush.bf16.msra.mxu0 %v897
    %917 = vmatpush.bf16.msra.mxu0 %v896
    %918 = vmatpush.bf16.msra.mxu0 %v895
    %919 = vmatmul.bf16.gmra.mxu0 %v842
    %v920 = vpop.f32.mrf.mxu0
    %v921 = vadd.f32 %v861, %v920
    %v922 = vpop.f32.mrf.mxu0
    %923 = vdwg.mxu0
    %v924 = vpack.c.bf16 %v921, %v921
    %v925 = vld [vmem:[%s9] sm:$0xf]
    %v926 = vld [vmem:[%s9 + $0x4] sm:$0xf]
    %v927 = vld [vmem:[%s10] sm:$0x1]
    %v929 = vperm.slane %v927, 0
    %v933 = vunpack.c.l.b16 %v925
    %v934 = vunpack.c.l.b16 %v926
    %v935 = vpack.c.b16 %v934, %v933
    %vm937 = vcmask 130048
    %v939 = vsel %vm937, %v924, 0
    %941 = vmatpush.bf16.msra.mxu0 0
    %942 = vmatpush.bf16.msra.mxu0 0
    %943 = vmatpush.bf16.msra.mxu0 0
    %944 = vmatpush.bf16.msra.mxu0 0
    %945 = vmatpush.bf16.msra.mxu0 0
    %946 = vmatpush.bf16.msra.mxu0 0
    %947 = vmatpush.bf16.msra.mxu0 0
    %948 = vmatpush.bf16.msra.mxu0 %v935
    %949 = vmatmul.bf16.gmra.mxu0 %v939
    %v950 = vpop.f32.mrf.mxu0
    %v951 = vadd.f32 %v929, %v950
    %v952 = vpop.f32.mrf.mxu0
    %953 = vdwg.mxu0
    %v954 = vtanh.pop %v951
    %v955 = vpack.c.bf16 %v954, %v954
    %v956 = vld [vmem:[%s11] sm:$0xff]
    %v957 = vld [vmem:[%s11 + $0x8] sm:$0xff]
    %v958 = vld [vmem:[%s11 + $0x10] sm:$0xff]
    %v959 = vld [vmem:[%s11 + $0x18] sm:$0xff]
    %v960 = vld [vmem:[%s11 + $0x20] sm:$0xff]
    %v961 = vld [vmem:[%s11 + $0x28] sm:$0xff]
    %v962 = vld [vmem:[%s11 + $0x30] sm:$0xff]
    %v963 = vld [vmem:[%s11 + $0x38] sm:$0xff]
    %v964 = vld [vmem:[%s11 + $0x40] sm:$0xff]
    %v965 = vld [vmem:[%s11 + $0x48] sm:$0xff]
    %v966 = vld [vmem:[%s11 + $0x50] sm:$0xff]
    %v967 = vld [vmem:[%s11 + $0x58] sm:$0xff]
    %v968 = vld [vmem:[%s11 + $0x60] sm:$0xff]
    %v969 = vld [vmem:[%s11 + $0x68] sm:$0xff]
    %v970 = vld [vmem:[%s11 + $0x70] sm:$0xff]
    %v971 = vld [vmem:[%s11 + $0x78] sm:$0xff]
    %v972 = vld [vmem:[%s12] sm:$0x3]
    %v974 = vperm.slane %v972, 0
    %v975 = vperm.slane %v972, 1
    %v994 = vunpack.c.l.b16 %v956
    %v995 = vunpack.c.h.b16 %v956
    %v996 = vunpack.c.l.b16 %v957
    %v997 = vunpack.c.h.b16 %v957
    %v998 = vunpack.c.l.b16 %v958
    %v999 = vunpack.c.h.b16 %v958
    %v1000 = vunpack.c.l.b16 %v959
    %v1001 = vunpack.c.h.b16 %v959
    %v1002 = vunpack.c.l.b16 %v960
    %v1003 = vunpack.c.h.b16 %v960
    %v1004 = vunpack.c.l.b16 %v961
    %v1005 = vunpack.c.h.b16 %v961
    %v1006 = vunpack.c.l.b16 %v962
    %v1007 = vunpack.c.h.b16 %v962
    %v1008 = vunpack.c.l.b16 %v963
    %v1009 = vunpack.c.h.b16 %v963
    %v1010 = vunpack.c.l.b16 %v964
    %v1011 = vunpack.c.h.b16 %v964
    %v1012 = vunpack.c.l.b16 %v965
    %v1013 = vunpack.c.h.b16 %v965
    %v1014 = vunpack.c.l.b16 %v966
    %v1015 = vunpack.c.h.b16 %v966
    %v1016 = vunpack.c.l.b16 %v967
    %v1017 = vunpack.c.h.b16 %v967
    %v1018 = vunpack.c.l.b16 %v968
    %v1019 = vunpack.c.h.b16 %v968
    %v1020 = vunpack.c.l.b16 %v969
    %v1021 = vunpack.c.h.b16 %v969
    %v1022 = vunpack.c.l.b16 %v970
    %v1023 = vunpack.c.h.b16 %v970
    %v1024 = vunpack.c.l.b16 %v971
    %v1025 = vunpack.c.h.b16 %v971
    %v1026 = vpack.c.b16 %v996, %v994
    %v1027 = vpack.c.b16 %v997, %v995
    %v1028 = vpack.c.b16 %v1000, %v998
    %v1029 = vpack.c.b16 %v1001, %v999
    %v1030 = vpack.c.b16 %v1004, %v1002
    %v1031 = vpack.c.b16 %v1005, %v1003
    %v1032 = vpack.c.b16 %v1008, %v1006
    %v1033 = vpack.c.b16 %v1009, %v1007
    %v1034 = vpack.c.b16 %v1012, %v1010
    %v1035 = vpack.c.b16 %v1013, %v1011
    %v1036 = vpack.c.b16 %v1016, %v1014
    %v1037 = vpack.c.b16 %v1017, %v1015
    %v1038 = vpack.c.b16 %v1020, %v1018
    %v1039 = vpack.c.b16 %v1021, %v1019
    %v1040 = vpack.c.b16 %v1024, %v1022
    %v1041 = vpack.c.b16 %v1025, %v1023
    %1058 = vmatpush.bf16.msra.mxu0 %v1040
    %1059 = vmatpush.bf16.msra.mxu0 %v1038
    %1060 = vmatpush.bf16.msra.mxu0 %v1036
    %1061 = vmatpush.bf16.msra.mxu0 %v1034
    %1062 = vmatpush.bf16.msra.mxu0 %v1032
    %1063 = vmatpush.bf16.msra.mxu0 %v1030
    %1064 = vmatpush.bf16.msra.mxu0 %v1028
    %1065 = vmatpush.bf16.msra.mxu0 %v1026
    %1066 = vmatmul.bf16.gmra.mxu0 %v955
    %v1067 = vpop.f32.mrf.mxu0
    %v1068 = vadd.f32 %v974, %v1067
    %v1069 = vpop.f32.mrf.mxu0
    %1070 = vdwg.mxu0
    %1071 = vmatpush.bf16.msra.mxu0 %v1041
    %1072 = vmatpush.bf16.msra.mxu0 %v1039
    %1073 = vmatpush.bf16.msra.mxu0 %v1037
    %1074 = vmatpush.bf16.msra.mxu0 %v1035
    %1075 = vmatpush.bf16.msra.mxu0 %v1033
    %1076 = vmatpush.bf16.msra.mxu0 %v1031
    %1077 = vmatpush.bf16.msra.mxu0 %v1029
    %1078 = vmatpush.bf16.msra.mxu0 %v1027
    %1079 = vmatmul.bf16.gmra.mxu0 %v955
    %v1080 = vpop.f32.mrf.mxu0
    %v1081 = vadd.f32 %v975, %v1080
    %v1082 = vpop.f32.mrf.mxu0
    %1083 = vdwg.mxu0
    %v1084 = vtanh.pop %v1068
    %v1085 = vtanh.pop %v1081
    %v1086 = vpack.c.bf16 %v1084, %v1084
    %v1087 = vpack.c.bf16 %v1085, %v1085
    %v1088 = vld [vmem:[%s13] sm:$0xff]
    %v1089 = vld [vmem:[%s13 + $0x8] sm:$0xff]
    %v1090 = vld [vmem:[%s13 + $0x10] sm:$0xff]
    %v1091 = vld [vmem:[%s13 + $0x18] sm:$0xff]
    %v1092 = vld [vmem:[%s13 + $0x20] sm:$0xff]
    %v1093 = vld [vmem:[%s13 + $0x28] sm:$0xff]
    %v1094 = vld [vmem:[%s13 + $0x30] sm:$0xff]
    %v1095 = vld [vmem:[%s13 + $0x38] sm:$0xff]
    %v1096 = vld [vmem:[%s13 + $0x40] sm:$0xff]
    %v1097 = vld [vmem:[%s13 + $0x48] sm:$0xff]
    %v1098 = vld [vmem:[%s13 + $0x50] sm:$0xff]
    %v1099 = vld [vmem:[%s13 + $0x58] sm:$0xff]
    %v1100 = vld [vmem:[%s13 + $0x60] sm:$0xff]
    %v1101 = vld [vmem:[%s13 + $0x68] sm:$0xff]
    %v1102 = vld [vmem:[%s13 + $0x70] sm:$0xff]
    %v1103 = vld [vmem:[%s13 + $0x78] sm:$0xff]
    %v1104 = vld [vmem:[%s13 + $0x80] sm:$0xff]
    %v1105 = vld [vmem:[%s13 + $0x88] sm:$0xff]
    %v1106 = vld [vmem:[%s13 + $0x90] sm:$0xff]
    %v1107 = vld [vmem:[%s13 + $0x98] sm:$0xff]
    %v1108 = vld [vmem:[%s13 + $0xa0] sm:$0xff]
    %v1109 = vld [vmem:[%s13 + $0xa8] sm:$0xff]
    %v1110 = vld [vmem:[%s13 + $0xb0] sm:$0xff]
    %v1111 = vld [vmem:[%s13 + $0xb8] sm:$0xff]
    %v1112 = vld [vmem:[%s13 + $0xc0] sm:$0xff]
    %v1113 = vld [vmem:[%s13 + $0xc8] sm:$0xff]
    %v1114 = vld [vmem:[%s13 + $0xd0] sm:$0xff]
    %v1115 = vld [vmem:[%s13 + $0xd8] sm:$0xff]
    %v1116 = vld [vmem:[%s13 + $0xe0] sm:$0xff]
    %v1117 = vld [vmem:[%s13 + $0xe8] sm:$0xff]
    %v1118 = vld [vmem:[%s13 + $0xf0] sm:$0xff]
    %v1119 = vld [vmem:[%s13 + $0xf8] sm:$0xff]
    %v1120 = vld [vmem:[%s14] sm:$0x3]
    %v1122 = vperm.slane %v1120, 0
    %v1123 = vperm.slane %v1120, 1
    %v1158 = vunpack.c.l.b16 %v1088
    %v1159 = vunpack.c.h.b16 %v1088
    %v1160 = vunpack.c.l.b16 %v1089
    %v1161 = vunpack.c.h.b16 %v1089
    %v1162 = vunpack.c.l.b16 %v1090
    %v1163 = vunpack.c.h.b16 %v1090
    %v1164 = vunpack.c.l.b16 %v1091
    %v1165 = vunpack.c.h.b16 %v1091
    %v1166 = vunpack.c.l.b16 %v1092
    %v1167 = vunpack.c.h.b16 %v1092
    %v1168 = vunpack.c.l.b16 %v1093
    %v1169 = vunpack.c.h.b16 %v1093
    %v1170 = vunpack.c.l.b16 %v1094
    %v1171 = vunpack.c.h.b16 %v1094
    %v1172 = vunpack.c.l.b16 %v1095
    %v1173 = vunpack.c.h.b16 %v1095
    %v1174 = vunpack.c.l.b16 %v1096
    %v1175 = vunpack.c.h.b16 %v1096
    %v1176 = vunpack.c.l.b16 %v1097
    %v1177 = vunpack.c.h.b16 %v1097
    %v1178 = vunpack.c.l.b16 %v1098
    %v1179 = vunpack.c.h.b16 %v1098
    %v1180 = vunpack.c.l.b16 %v1099
    %v1181 = vunpack.c.h.b16 %v1099
    %v1182 = vunpack.c.l.b16 %v1100
    %v1183 = vunpack.c.h.b16 %v1100
    %v1184 = vunpack.c.l.b16 %v1101
    %v1185 = vunpack.c.h.b16 %v1101
    %v1186 = vunpack.c.l.b16 %v1102
    %v1187 = vunpack.c.h.b16 %v1102
    %v1188 = vunpack.c.l.b16 %v1103
    %v1189 = vunpack.c.h.b16 %v1103
    %v1190 = vunpack.c.l.b16 %v1104
    %v1191 = vunpack.c.h.b16 %v1104
    %v1192 = vunpack.c.l.b16 %v1105
    %v1193 = vunpack.c.h.b16 %v1105
    %v1194 = vunpack.c.l.b16 %v1106
    %v1195 = vunpack.c.h.b16 %v1106
    %v1196 = vunpack.c.l.b16 %v1107
    %v1197 = vunpack.c.h.b16 %v1107
    %v1198 = vunpack.c.l.b16 %v1108
    %v1199 = vunpack.c.h.b16 %v1108
    %v1200 = vunpack.c.l.b16 %v1109
    %v1201 = vunpack.c.h.b16 %v1109
    %v1202 = vunpack.c.l.b16 %v1110
    %v1203 = vunpack.c.h.b16 %v1110
    %v1204 = vunpack.c.l.b16 %v1111
    %v1205 = vunpack.c.h.b16 %v1111
    %v1206 = vunpack.c.l.b16 %v1112
    %v1207 = vunpack.c.h.b16 %v1112
    %v1208 = vunpack.c.l.b16 %v1113
    %v1209 = vunpack.c.h.b16 %v1113
    %v1210 = vunpack.c.l.b16 %v1114
    %v1211 = vunpack.c.h.b16 %v1114
    %v1212 = vunpack.c.l.b16 %v1115
    %v1213 = vunpack.c.h.b16 %v1115
    %v1214 = vunpack.c.l.b16 %v1116
    %v1215 = vunpack.c.h.b16 %v1116
    %v1216 = vunpack.c.l.b16 %v1117
    %v1217 = vunpack.c.h.b16 %v1117
    %v1218 = vunpack.c.l.b16 %v1118
    %v1219 = vunpack.c.h.b16 %v1118
    %v1220 = vunpack.c.l.b16 %v1119
    %v1221 = vunpack.c.h.b16 %v1119
    %v1222 = vpack.c.b16 %v1160, %v1158
    %v1223 = vpack.c.b16 %v1161, %v1159
    %v1224 = vpack.c.b16 %v1164, %v1162
    %v1225 = vpack.c.b16 %v1165, %v1163
    %v1226 = vpack.c.b16 %v1168, %v1166
    %v1227 = vpack.c.b16 %v1169, %v1167
    %v1228 = vpack.c.b16 %v1172, %v1170
    %v1229 = vpack.c.b16 %v1173, %v1171
    %v1230 = vpack.c.b16 %v1176, %v1174
    %v1231 = vpack.c.b16 %v1177, %v1175
    %v1232 = vpack.c.b16 %v1180, %v1178
    %v1233 = vpack.c.b16 %v1181, %v1179
    %v1234 = vpack.c.b16 %v1184, %v1182
    %v1235 = vpack.c.b16 %v1185, %v1183
    %v1236 = vpack.c.b16 %v1188, %v1186
    %v1237 = vpack.c.b16 %v1189, %v1187
    %v1238 = vpack.c.b16 %v1192, %v1190
    %v1239 = vpack.c.b16 %v1193, %v1191
    %v1240 = vpack.c.b16 %v1196, %v1194
    %v1241 = vpack.c.b16 %v1197, %v1195
    %v1242 = vpack.c.b16 %v1200, %v1198
    %v1243 = vpack.c.b16 %v1201, %v1199
    %v1244 = vpack.c.b16 %v1204, %v1202
    %v1245 = vpack.c.b16 %v1205, %v1203
    %v1246 = vpack.c.b16 %v1208, %v1206
    %v1247 = vpack.c.b16 %v1209, %v1207
    %v1248 = vpack.c.b16 %v1212, %v1210
    %v1249 = vpack.c.b16 %v1213, %v1211
    %v1250 = vpack.c.b16 %v1216, %v1214
    %v1251 = vpack.c.b16 %v1217, %v1215
    %v1252 = vpack.c.b16 %v1220, %v1218
    %v1253 = vpack.c.b16 %v1221, %v1219
    %1286 = vmatpush.bf16.msra.mxu0 %v1236
    %1287 = vmatpush.bf16.msra.mxu0 %v1234
    %1288 = vmatpush.bf16.msra.mxu0 %v1232
    %1289 = vmatpush.bf16.msra.mxu0 %v1230
    %1290 = vmatpush.bf16.msra.mxu0 %v1228
    %1291 = vmatpush.bf16.msra.mxu0 %v1226
    %1292 = vmatpush.bf16.msra.mxu0 %v1224
    %1293 = vmatpush.bf16.msra.mxu0 %v1222
    %1294 = vmatmul.bf16.gmra.mxu0 %v1086
    %v1295 = vpop.f32.mrf.mxu0
    %v1296 = vadd.f32 %v1122, %v1295
    %v1297 = vpop.f32.mrf.mxu0
    %1298 = vdwg.mxu0
    %1299 = vmatpush.bf16.msra.mxu0 %v1252
    %1300 = vmatpush.bf16.msra.mxu0 %v1250
    %1301 = vmatpush.bf16.msra.mxu0 %v1248
    %1302 = vmatpush.bf16.msra.mxu0 %v1246
    %1303 = vmatpush.bf16.msra.mxu0 %v1244
    %1304 = vmatpush.bf16.msra.mxu0 %v1242
    %1305 = vmatpush.bf16.msra.mxu0 %v1240
    %1306 = vmatpush.bf16.msra.mxu0 %v1238
    %1307 = vmatmul.bf16.gmra.mxu0 %v1087
    %v1308 = vpop.f32.mrf.mxu0
    %v1309 = vadd.f32 %v1296, %v1308
    %v1310 = vpop.f32.mrf.mxu0
    %1311 = vdwg.mxu0
    %1312 = vmatpush.bf16.msra.mxu0 %v1237
    %1313 = vmatpush.bf16.msra.mxu0 %v1235
    %1314 = vmatpush.bf16.msra.mxu0 %v1233
    %1315 = vmatpush.bf16.msra.mxu0 %v1231
    %1316 = vmatpush.bf16.msra.mxu0 %v1229
    %1317 = vmatpush.bf16.msra.mxu0 %v1227
    %1318 = vmatpush.bf16.msra.mxu0 %v1225
    %1319 = vmatpush.bf16.msra.mxu0 %v1223
    %1320 = vmatmul.bf16.gmra.mxu0 %v1086
    %v1321 = vpop.f32.mrf.mxu0
    %v1322 = vadd.f32 %v1123, %v1321
    %v1323 = vpop.f32.mrf.mxu0
    %1324 = vdwg.mxu0
    %1325 = vmatpush.bf16.msra.mxu0 %v1253
    %1326 = vmatpush.bf16.msra.mxu0 %v1251
    %1327 = vmatpush.bf16.msra.mxu0 %v1249
    %1328 = vmatpush.bf16.msra.mxu0 %v1247
    %1329 = vmatpush.bf16.msra.mxu0 %v1245
    %1330 = vmatpush.bf16.msra.mxu0 %v1243
    %1331 = vmatpush.bf16.msra.mxu0 %v1241
    %1332 = vmatpush.bf16.msra.mxu0 %v1239
    %1333 = vmatmul.bf16.gmra.mxu0 %v1087
    %v1334 = vpop.f32.mrf.mxu0
    %v1335 = vadd.f32 %v1322, %v1334
    %v1336 = vpop.f32.mrf.mxu0
    %1337 = vdwg.mxu0
    %v1338 = vtanh.pop %v1309
    %v1339 = vtanh.pop %v1335
    %v1340 = vpack.c.bf16 %v1338, %v1338
    %v1341 = vpack.c.bf16 %v1339, %v1339
    %v1342 = vld [vmem:[%s15] sm:$0xf]
    %v1343 = vld [vmem:[%s15 + $0x4] sm:$0xf]
    %v1344 = vld [vmem:[%s15 + $0x8] sm:$0xf]
    %v1345 = vld [vmem:[%s15 + $0xc] sm:$0xf]
    %v1346 = vld [vmem:[%s15 + $0x10] sm:$0xf]
    %v1347 = vld [vmem:[%s15 + $0x14] sm:$0xf]
    %v1348 = vld [vmem:[%s15 + $0x18] sm:$0xf]
    %v1349 = vld [vmem:[%s15 + $0x1c] sm:$0xf]
    %v1350 = vld [vmem:[%s15 + $0x20] sm:$0xf]
    %v1351 = vld [vmem:[%s15 + $0x24] sm:$0xf]
    %v1352 = vld [vmem:[%s15 + $0x28] sm:$0xf]
    %v1353 = vld [vmem:[%s15 + $0x2c] sm:$0xf]
    %v1354 = vld [vmem:[%s15 + $0x30] sm:$0xf]
    %v1355 = vld [vmem:[%s15 + $0x34] sm:$0xf]
    %v1356 = vld [vmem:[%s15 + $0x38] sm:$0xf]
    %v1357 = vld [vmem:[%s15 + $0x3c] sm:$0xf]
    %v1358 = vld [vmem:[%s15 + $0x40] sm:$0xf]
    %v1359 = vld [vmem:[%s15 + $0x44] sm:$0xf]
    %v1360 = vld [vmem:[%s15 + $0x48] sm:$0xf]
    %v1361 = vld [vmem:[%s15 + $0x4c] sm:$0xf]
    %v1362 = vld [vmem:[%s15 + $0x50] sm:$0xf]
    %v1363 = vld [vmem:[%s15 + $0x54] sm:$0xf]
    %v1364 = vld [vmem:[%s15 + $0x58] sm:$0xf]
    %v1365 = vld [vmem:[%s15 + $0x5c] sm:$0xf]
    %v1366 = vld [vmem:[%s15 + $0x60] sm:$0xf]
    %v1367 = vld [vmem:[%s15 + $0x64] sm:$0xf]
    %v1368 = vld [vmem:[%s15 + $0x68] sm:$0xf]
    %v1369 = vld [vmem:[%s15 + $0x6c] sm:$0xf]
    %v1370 = vld [vmem:[%s15 + $0x70] sm:$0xf]
    %v1371 = vld [vmem:[%s15 + $0x74] sm:$0xf]
    %v1372 = vld [vmem:[%s15 + $0x78] sm:$0xf]
    %v1373 = vld [vmem:[%s15 + $0x7c] sm:$0xf]
    %v1374 = vld [vmem:[%s16] sm:$0x1]
    %v1376 = vperm.slane %v1374, 0
    %v1410 = vunpack.c.l.b16 %v1342
    %v1411 = vunpack.c.l.b16 %v1343
    %v1412 = vunpack.c.l.b16 %v1344
    %v1413 = vunpack.c.l.b16 %v1345
    %v1414 = vunpack.c.l.b16 %v1346
    %v1415 = vunpack.c.l.b16 %v1347
    %v1416 = vunpack.c.l.b16 %v1348
    %v1417 = vunpack.c.l.b16 %v1349
    %v1418 = vunpack.c.l.b16 %v1350
    %v1419 = vunpack.c.l.b16 %v1351
    %v1420 = vunpack.c.l.b16 %v1352
    %v1421 = vunpack.c.l.b16 %v1353
    %v1422 = vunpack.c.l.b16 %v1354
    %v1423 = vunpack.c.l.b16 %v1355
    %v1424 = vunpack.c.l.b16 %v1356
    %v1425 = vunpack.c.l.b16 %v1357
    %v1426 = vunpack.c.l.b16 %v1358
    %v1427 = vunpack.c.l.b16 %v1359
    %v1428 = vunpack.c.l.b16 %v1360
    %v1429 = vunpack.c.l.b16 %v1361
    %v1430 = vunpack.c.l.b16 %v1362
    %v1431 = vunpack.c.l.b16 %v1363
    %v1432 = vunpack.c.l.b16 %v1364
    %v1433 = vunpack.c.l.b16 %v1365
    %v1434 = vunpack.c.l.b16 %v1366
    %v1435 = vunpack.c.l.b16 %v1367
    %v1436 = vunpack.c.l.b16 %v1368
    %v1437 = vunpack.c.l.b16 %v1369
    %v1438 = vunpack.c.l.b16 %v1370
    %v1439 = vunpack.c.l.b16 %v1371
    %v1440 = vunpack.c.l.b16 %v1372
    %v1441 = vunpack.c.l.b16 %v1373
    %v1442 = vpack.c.b16 %v1411, %v1410
    %v1443 = vpack.c.b16 %v1413, %v1412
    %v1444 = vpack.c.b16 %v1415, %v1414
    %v1445 = vpack.c.b16 %v1417, %v1416
    %v1446 = vpack.c.b16 %v1419, %v1418
    %v1447 = vpack.c.b16 %v1421, %v1420
    %v1448 = vpack.c.b16 %v1423, %v1422
    %v1449 = vpack.c.b16 %v1425, %v1424
    %v1450 = vpack.c.b16 %v1427, %v1426
    %v1451 = vpack.c.b16 %v1429, %v1428
    %v1452 = vpack.c.b16 %v1431, %v1430
    %v1453 = vpack.c.b16 %v1433, %v1432
    %v1454 = vpack.c.b16 %v1435, %v1434
    %v1455 = vpack.c.b16 %v1437, %v1436
    %v1456 = vpack.c.b16 %v1439, %v1438
    %v1457 = vpack.c.b16 %v1441, %v1440
    %1474 = vmatpush.bf16.msra.mxu0 %v1449
    %1475 = vmatpush.bf16.msra.mxu0 %v1448
    %1476 = vmatpush.bf16.msra.mxu0 %v1447
    %1477 = vmatpush.bf16.msra.mxu0 %v1446
    %1478 = vmatpush.bf16.msra.mxu0 %v1445
    %1479 = vmatpush.bf16.msra.mxu0 %v1444
    %1480 = vmatpush.bf16.msra.mxu0 %v1443
    %1481 = vmatpush.bf16.msra.mxu0 %v1442
    %1482 = vmatmul.bf16.gmra.mxu0 %v1340
    %v1483 = vpop.f32.mrf.mxu0
    %v1484 = vadd.f32 %v1376, %v1483
    %v1485 = vpop.f32.mrf.mxu0
    %1486 = vdwg.mxu0
    %1487 = vmatpush.bf16.msra.mxu0 %v1457
    %1488 = vmatpush.bf16.msra.mxu0 %v1456
    %1489 = vmatpush.bf16.msra.mxu0 %v1455
    %1490 = vmatpush.bf16.msra.mxu0 %v1454
    %1491 = vmatpush.bf16.msra.mxu0 %v1453
    %1492 = vmatpush.bf16.msra.mxu0 %v1452
    %1493 = vmatpush.bf16.msra.mxu0 %v1451
    %1494 = vmatpush.bf16.msra.mxu0 %v1450
    %1495 = vmatmul.bf16.gmra.mxu0 %v1341
    %v1496 = vpop.f32.mrf.mxu0
    %v1497 = vadd.f32 %v1484, %v1496
    %v1498 = vpop.f32.mrf.mxu0
    %1499 = vdwg.mxu0
    %v1500 = vsub.f32 0.0, %v1497
    %v1501 = vmul.f32 %v1500, 1.442695
    %v1502 = vpow.pop %v1501
    %v1503 = vadd.f32 %v1502, 1.0
    %v1504 = vrcp.pop %v1503
    %1505 = vst.msk [vmem:[#allocation2] sm:$0xff] %vm937, %v921
    %1506 = vst.msk [vmem:[#allocation4] sm:$0xff] %vm121, %v1504
    // Predicated region
    $region70: #{autoencoder_forward.1} parent=1 // pred_check
      _
    $region71: #{autoencoder_forward.1} parent=1 // pred_check_branch
      %1508 = sbr.rel (0) target = $region73
    $region72: #{autoencoder_forward.1} parent=1 // pred_region
      %1510 = vsyncadd [#allocation3], 0
      %s1512 = sshll.u32 [#allocation2], 4
      %s1513 = int_to_ptr.vmem [resolvable:$true] %s1512
      %s1514 = sshll.u32 %s17, 4
      %s1515 = int_to_ptr.hbm [resolvable:$true] %s1514
      %1517 = dma.vmem_to_hbm [thread:$0]  %s1513, 128, %s1515, [#allocation3]
    $region73: #{autoencoder_forward.1} parent=1 // pred_fallthru
      _
    // Predicated region
    $region74: #{autoencoder_forward.1} parent=1 // pred_check
      _
    $region75: #{autoencoder_forward.1} parent=1 // pred_check_branch
      %1519 = sbr.rel (0) target = $region77
    $region76: #{autoencoder_forward.1} parent=1 // pred_region
      %1521 = vsyncadd [#allocation5], 0
      %s1523 = sshll.u32 [#allocation4], 4
      %s1524 = int_to_ptr.vmem [resolvable:$true] %s1523
      %s1525 = sshll.u32 %s18, 4
      %s1526 = int_to_ptr.hbm [resolvable:$true] %s1525
      %1528 = dma.vmem_to_hbm [thread:$0]  %s1524, 128, %s1526, [#allocation5]
    $region77: #{autoencoder_forward.1} parent=1 // pred_fallthru
      _
    // Predicated region
    $region78: #{autoencoder_forward.1} parent=1 // pred_check
      _
    $region79: #{autoencoder_forward.1} parent=1 // pred_check_branch
      %1530 = sbr.rel (0) target = $region81
    $region80: #{autoencoder_forward.1} parent=1 // pred_region
      %1532 = dma.done [#allocation3], 128
    $region81: #{autoencoder_forward.1} parent=1 // pred_fallthru
      _
    // Predicated region
    $region82: #{autoencoder_forward.1} parent=1 // pred_check
      _
    $region83: #{autoencoder_forward.1} parent=1 // pred_check_branch
      %1534 = sbr.rel (0) target = $region85
    $region84: #{autoencoder_forward.1} parent=1 // pred_region
      %1536 = dma.done [#allocation5], 128
    $region85: #{autoencoder_forward.1} parent=1 // pred_fallthru
      _
    %1537 = vsyncpa [#allocation3], 1
    %1538 = vsyncpa [#allocation5], 1

</llo_original>
